<compile_context>
chip_gen: v7x
topology: tpu7x:2x2x1
jax: 0.10.0
libtpu: 0.0.40
codegen_flags: <defaults>
</compile_context>

<pallas_src>
import functools

import jax
import jax.numpy as jnp
from jax.experimental import pallas as pl
from jax.experimental.pallas import tpu as pltpu

BN_EPS = 1e-5
IN_FEATURES = 784
IN_PADDED = 896            # 7 * 128 lanes
OUT_FEATURES = 10
OUT_PADDED = 128
NEG_FILL = -1e30           # bias on padded logit columns -> exp() == 0
FUSED_MAX_ROWS = 512       # batches up to this run as one fused call
TILE_ROWS = 512            # batch-tile size for the gridded path (512+ rows
                           # keeps per-grid-step overhead amortized)


def _round_up(x, m):
    return (x + m - 1) // m * m


# ---------------------------------------------------------------------------
# Fused single-call kernel (batch <= FUSED_MAX_ROWS).
# ---------------------------------------------------------------------------
def _bn_relu_bf16(h, gamma, beta):
    """Training-mode BatchNorm1d (batch stats, biased var) + ReLU -> bf16.

    `h` is the (N, F) f32 matmul result WITHOUT the linear bias (a per-feature
    constant cancels exactly inside batch normalization).
    """
    n_inv = 1.0 / h.shape[0]
    mean = jnp.sum(h, axis=0, keepdims=True) * n_inv
    mean_sq = jnp.sum(h * h, axis=0, keepdims=True) * n_inv
    var = jnp.maximum(mean_sq - mean * mean, 0.0)        # clamp f32 cancellation
    scale = gamma * jax.lax.rsqrt(var + BN_EPS)
    shift = beta - mean * scale
    return jnp.maximum(h * scale + shift, 0.0).astype(jnp.bfloat16)


def fused_mlp_kernel(x_ref,
                     w1_ref, g1_ref, be1_ref,
                     w2_ref, g2_ref, be2_ref,
                     w3_ref, g3_ref, be3_ref,
                     w4_ref, b4_ref,
                     out_ref):
    x = x_ref[...]
    h1 = _bn_relu_bf16(jnp.dot(x, w1_ref[...], preferred_element_type=jnp.float32),
                       g1_ref[...], be1_ref[...])
    h2 = _bn_relu_bf16(jnp.dot(h1, w2_ref[...], preferred_element_type=jnp.float32),
                       g2_ref[...], be2_ref[...])
    h3 = _bn_relu_bf16(jnp.dot(h2, w3_ref[...], preferred_element_type=jnp.float32),
                       g3_ref[...], be3_ref[...])
    logits = jnp.dot(h3, w4_ref[...], preferred_element_type=jnp.float32) + b4_ref[...]
    m = jnp.max(logits, axis=-1, keepdims=True)
    e = jnp.exp(logits - m)
    out_ref[...] = e / jnp.sum(e, axis=-1, keepdims=True)   # exact divide


def _fused_call(x_padded, kp):
    n = x_padded.shape[0]
    vmem = pl.BlockSpec(memory_space=pltpu.MemorySpace.VMEM)
    args = (x_padded,
            kp["w1"], kp["g1"], kp["be1"],
            kp["w2"], kp["g2"], kp["be2"],
            kp["w3"], kp["g3"], kp["be3"],
            kp["w4"], kp["b4"])
    return pl.pallas_call(
        fused_mlp_kernel,
        out_shape=jax.ShapeDtypeStruct((n, OUT_PADDED), jnp.float32),
        in_specs=[vmem] * len(args),
        out_specs=vmem,
        compiler_params=pltpu.CompilerParams(vmem_limit_bytes=32 << 20),
    )(*args)


# ---------------------------------------------------------------------------
# Batch-gridded path (batch > FUSED_MAX_ROWS, or forced for testing).
# One pallas_call per Linear layer; batch tiles stream, weights stay resident.
# Each call also emits per-tile partial BN statistics of its pre-BN output;
# a tiny XLA combine produces the exact full-batch scale/shift for the next
# call, so training-mode BatchNorm semantics hold at any batch size.
# ---------------------------------------------------------------------------
def linear_stats_kernel(x_ref, w_ref, a_ref, sum_ref, sq_ref):
    a = jnp.dot(x_ref[...], w_ref[...], preferred_element_type=jnp.float32)
    a_ref[...] = a
    sum_ref[...] = jnp.sum(a, axis=0, keepdims=True)[None]
    sq_ref[...] = jnp.sum(a * a, axis=0, keepdims=True)[None]


def bn_relu_linear_stats_kernel(n_real, tile_rows,
                                a_in_ref, scale_ref, shift_ref, w_ref,
                                a_out_ref, sum_ref, sq_ref):
    h = jnp.maximum(a_in_ref[...] * scale_ref[...] + shift_ref[...], 0.0)
    if n_real % tile_rows:
        # Zero the batch-padding rows so they contribute 0 to the next layer's
        # statistics (input padding rows are zero by construction, but BN's
        # shift would otherwise make them non-zero here).
        row = (jax.lax.broadcasted_iota(jnp.int32, (tile_rows, 1), 0)
               + pl.program_id(0) * tile_rows)
        h = jnp.where(row < n_real, h, 0.0)
    a = jnp.dot(h.astype(jnp.bfloat16), w_ref[...],
                preferred_element_type=jnp.float32)
    a_out_ref[...] = a
    sum_ref[...] = jnp.sum(a, axis=0, keepdims=True)[None]
    sq_ref[...] = jnp.sum(a * a, axis=0, keepdims=True)[None]


def bn_relu_linear_softmax_kernel(a_in_ref, scale_ref, shift_ref, w_ref, b_ref,
                                  out_ref):
    h = jnp.maximum(a_in_ref[...] * scale_ref[...] + shift_ref[...], 0.0)
    logits = jnp.dot(h.astype(jnp.bfloat16), w_ref[...],
                     preferred_element_type=jnp.float32) + b_ref[...]
    m = jnp.max(logits, axis=-1, keepdims=True)
    e = jnp.exp(logits - m)
    out_ref[...] = e / jnp.sum(e, axis=-1, keepdims=True)


_GRID_PARAMS = pltpu.CompilerParams(dimension_semantics=("parallel",),
                                    vmem_limit_bytes=32 << 20)


def _linear_stats_call(x, w, tile):
    n_pad, d_in = x.shape
    d_out = w.shape[1]
    t = n_pad // tile
    return pl.pallas_call(
        linear_stats_kernel,
        grid=(t,),
        in_specs=[pl.BlockSpec((tile, d_in), lambda i: (i, 0)),
                  pl.BlockSpec((d_in, d_out), lambda i: (0, 0))],   # resident
        out_specs=(pl.BlockSpec((tile, d_out), lambda i: (i, 0)),
                   pl.BlockSpec((1, 1, d_out), lambda i: (i, 0, 0)),
                   pl.BlockSpec((1, 1, d_out), lambda i: (i, 0, 0))),
        out_shape=(jax.ShapeDtypeStruct((n_pad, d_out), jnp.float32),
                   jax.ShapeDtypeStruct((t, 1, d_out), jnp.float32),
                   jax.ShapeDtypeStruct((t, 1, d_out), jnp.float32)),
        compiler_params=_GRID_PARAMS,
    )(x, w)


def _bn_relu_linear_stats_call(a_in, scale, shift, w, n_real, tile):
    n_pad, d_in = a_in.shape
    d_out = w.shape[1]
    t = n_pad // tile
    kernel = functools.partial(bn_relu_linear_stats_kernel, n_real, tile)
    return pl.pallas_call(
        kernel,
        grid=(t,),
        in_specs=[pl.BlockSpec((tile, d_in), lambda i: (i, 0)),
                  pl.BlockSpec((1, d_in), lambda i: (0, 0)),
                  pl.BlockSpec((1, d_in), lambda i: (0, 0)),
                  pl.BlockSpec((d_in, d_out), lambda i: (0, 0))],   # resident
        out_specs=(pl.BlockSpec((tile, d_out), lambda i: (i, 0)),
                   pl.BlockSpec((1, 1, d_out), lambda i: (i, 0, 0)),
                   pl.BlockSpec((1, 1, d_out), lambda i: (i, 0, 0))),
        out_shape=(jax.ShapeDtypeStruct((n_pad, d_out), jnp.float32),
                   jax.ShapeDtypeStruct((t, 1, d_out), jnp.float32),
                   jax.ShapeDtypeStruct((t, 1, d_out), jnp.float32)),
        compiler_params=_GRID_PARAMS,
    )(a_in, scale, shift, w)


def _bn_relu_linear_softmax_call(a_in, scale, shift, w, b, tile):
    n_pad, d_in = a_in.shape
    d_out = w.shape[1]
    t = n_pad // tile
    return pl.pallas_call(
        bn_relu_linear_softmax_kernel,
        grid=(t,),
        in_specs=[pl.BlockSpec((tile, d_in), lambda i: (i, 0)),
                  pl.BlockSpec((1, d_in), lambda i: (0, 0)),
                  pl.BlockSpec((1, d_in), lambda i: (0, 0)),
                  pl.BlockSpec((d_in, d_out), lambda i: (0, 0)),
                  pl.BlockSpec((1, d_out), lambda i: (0, 0))],
        out_specs=pl.BlockSpec((tile, d_out), lambda i: (i, 0)),
        out_shape=jax.ShapeDtypeStruct((n_pad, d_out), jnp.float32),
        compiler_params=_GRID_PARAMS,
    )(a_in, scale, shift, w, b)


def _bn_scale_shift(psum, psumsq, n_real, gamma, beta):
    """Exact full-batch BN scale/shift from per-tile partial sums (tiny XLA op)."""
    mean = jnp.sum(psum, axis=0) / n_real                          # (1, F)
    var = jnp.maximum(jnp.sum(psumsq, axis=0) / n_real - mean * mean, 0.0)
    scale = gamma * jax.lax.rsqrt(var + BN_EPS)
    shift = beta - mean * scale
    return scale, shift


# ---------------------------------------------------------------------------
# Forward wrapper.
# ---------------------------------------------------------------------------
@functools.partial(jax.jit, static_argnames=("tile_rows", "fused_max_rows"))
def net_forward(x_nchw, kparams, tile_rows=TILE_ROWS, fused_max_rows=FUSED_MAX_ROWS):
    n = x_nchw.shape[0]
    x = x_nchw.reshape(n, -1).astype(jnp.bfloat16)        # cast BEFORE pad

    if n <= fused_max_rows:
        x = jnp.pad(x, ((0, 0), (0, IN_PADDED - IN_FEATURES)))
        return _fused_call(x, kparams)[:, :OUT_FEATURES]

    tile = min(tile_rows, _round_up(n, 8))
    assert tile % 8 == 0
    n_pad = _round_up(n, tile)
    x = jnp.pad(x, ((0, n_pad - n), (0, IN_PADDED - IN_FEATURES)))

    a1, s1, q1 = _linear_stats_call(x, kparams["w1"], tile)
    sc1, sh1 = _bn_scale_shift(s1, q1, n, kparams["g1"], kparams["be1"])
    a2, s2, q2 = _bn_relu_linear_stats_call(a1, sc1, sh1, kparams["w2"], n, tile)
    sc2, sh2 = _bn_scale_shift(s2, q2, n, kparams["g2"], kparams["be2"])
    a3, s3, q3 = _bn_relu_linear_stats_call(a2, sc2, sh2, kparams["w3"], n, tile)
    sc3, sh3 = _bn_scale_shift(s3, q3, n, kparams["g3"], kparams["be3"])
    probs = _bn_relu_linear_softmax_call(a3, sc3, sh3, kparams["w4"],
                                         kparams["b4"], tile)
    return probs[:n, :OUT_FEATURES]


# ---------------------------------------------------------------------------
# Parameters (PyTorch layout) + one-time kernel-layout transform + reference.
# ---------------------------------------------------------------------------
def make_params(key):
    """PyTorch-layout params: weights (out, in), biases (out,), BN gamma=1/beta=0."""
    dims = [IN_FEATURES, 512, 256, 128, OUT_FEATURES]
    params = {}
    keys = jax.random.split(key, 8)
    ki = 0
    for layer in range(1, 5):
        d_in, d_out = dims[layer - 1], dims[layer]
        bound = 1.0 / (d_in ** 0.5)
        params[f"w{layer}"] = jax.random.uniform(
            keys[ki], (d_out, d_in), jnp.float32, -bound, bound); ki += 1
        params[f"b{layer}"] = jax.random.uniform(
            keys[ki], (d_out,), jnp.float32, -bound, bound); ki += 1
        if layer < 4:
            params[f"g{layer}"] = jnp.ones((d_out,), jnp.float32)
            params[f"be{layer}"] = jnp.zeros((d_out,), jnp.float32)
    return params


def prepare_kernel_params(params):
    """One-time transform: transpose to (in, out), pad to 128 multiples, cast bf16."""
    w1 = jnp.pad(params["w1"].T, ((0, IN_PADDED - IN_FEATURES), (0, 0)))     # (896, 512)
    w4 = jnp.pad(params["w4"].T, ((0, 0), (0, OUT_PADDED - OUT_FEATURES)))   # (128, 128)
    b4 = jnp.full((1, OUT_PADDED), NEG_FILL, jnp.float32)
    b4 = b4.at[0, :OUT_FEATURES].set(params["b4"])
    kp = {
        "w1": w1.astype(jnp.bfloat16),
        "w2": params["w2"].T.astype(jnp.bfloat16),
        "w3": params["w3"].T.astype(jnp.bfloat16),
        "w4": w4.astype(jnp.bfloat16),
        "b4": b4,
    }
    for layer in (1, 2, 3):
        kp[f"g{layer}"] = params[f"g{layer}"].reshape(1, -1)
        kp[f"be{layer}"] = params[f"be{layer}"].reshape(1, -1)
    # b1/b2/b3 intentionally omitted: a per-feature constant added before
    # training-mode BatchNorm cancels exactly in the normalization.
    return kp


def reference_forward(x_nchw, params):
    """Pure-JAX f32 reference matching the PyTorch module (training-mode BN)."""
    h = x_nchw.reshape(x_nchw.shape[0], -1).astype(jnp.float32)
    for layer in (1, 2, 3):
        h = h @ params[f"w{layer}"].T + params[f"b{layer}"]
        mu = jnp.mean(h, axis=0)
        var = jnp.mean((h - mu) ** 2, axis=0)
        h = (h - mu) / jnp.sqrt(var + BN_EPS) * params[f"g{layer}"] + params[f"be{layer}"]
        h = jnp.maximum(h, 0.0)
    logits = h @ params["w4"].T + params["b4"]
    return jax.nn.softmax(logits, axis=-1)


if __name__ == "__main__":
    key = jax.random.PRNGKey(0)
    k_x1, k_x2, k_p = jax.random.split(key, 3)

    params = make_params(k_p)
    kparams = prepare_kernel_params(params)

    # Path 1: small batch -> single fused kernel call.
    batch1 = 8
    x1 = jax.random.normal(k_x1, (batch1, 1, 28, 28), jnp.float32)   # NCHW, MNIST-like
    out1 = jax.block_until_ready(net_forward(x1, kparams))
    ref1 = reference_forward(x1, params)
    assert out1.shape == (batch1, OUT_FEATURES)
    assert bool(jnp.all(jnp.abs(jnp.sum(out1, axis=-1) - 1.0) < 1e-2))
    assert bool(jnp.max(jnp.abs(out1 - ref1)) < 5e-2)

    # Path 2: batch-gridded path, forced with small tiles so the grid, the
    # ragged last tile (row masking) and the cross-tile exact BN statistics
    # are all exercised at small shapes.
    batch2 = 40
    x2 = jax.random.normal(k_x2, (batch2, 1, 28, 28), jnp.float32)
    out2 = jax.block_until_ready(
        net_forward(x2, kparams, tile_rows=16, fused_max_rows=0))
    ref2 = reference_forward(x2, params)
    assert out2.shape == (batch2, OUT_FEATURES)
    assert bool(jnp.all(jnp.abs(jnp.sum(out2, axis=-1) - 1.0) < 1e-2))
    assert bool(jnp.max(jnp.abs(out2 - ref2)) < 5e-2)

    print("KERNEL_OK")
</pallas_src>

<mosaic_0001>
module attributes {stable_mosaic.version = 11 : i64} {
  func.func @fused_mlp_kernel(%arg0: memref<8x896xbf16, #tpu.memory_space<vmem>>, %arg1: memref<896x512xbf16, #tpu.memory_space<vmem>>, %arg2: memref<1x512xf32, #tpu.memory_space<vmem>>, %arg3: memref<1x512xf32, #tpu.memory_space<vmem>>, %arg4: memref<512x256xbf16, #tpu.memory_space<vmem>>, %arg5: memref<1x256xf32, #tpu.memory_space<vmem>>, %arg6: memref<1x256xf32, #tpu.memory_space<vmem>>, %arg7: memref<256x128xbf16, #tpu.memory_space<vmem>>, %arg8: memref<1x128xf32, #tpu.memory_space<vmem>>, %arg9: memref<1x128xf32, #tpu.memory_space<vmem>>, %arg10: memref<128x128xbf16, #tpu.memory_space<vmem>>, %arg11: memref<1x128xf32, #tpu.memory_space<vmem>>, %arg12: memref<8x128xf32, #tpu.memory_space<vmem>>) attributes {dimension_semantics = [], scalar_prefetch = 0 : i64, scratch_operands = 0 : i64, tpu.core_type = #tpu.core_type<tc>} {
    %c0 = arith.constant 0 : index
    %c0_0 = arith.constant 0 : index
    %0 = vector.load %arg0[%c0, %c0_0] : memref<8x896xbf16, #tpu.memory_space<vmem>>, vector<8x896xbf16>
    %c0_1 = arith.constant 0 : index
    %c0_2 = arith.constant 0 : index
    %1 = vector.load %arg1[%c0_1, %c0_2] : memref<896x512xbf16, #tpu.memory_space<vmem>>, vector<896x512xbf16>
    %cst = arith.constant dense<0.000000e+00> : vector<8x512xf32>
    %2 = tpu.matmul %0, %1, %cst {dimension_numbers = #tpu.dot_dimension_numbers<[1], [0], [0], [1], [0, 0, 1, 1], [], []>} : vector<8x896xbf16>, vector<896x512xbf16>, vector<8x512xf32> -> vector<8x512xf32>
    %c0_3 = arith.constant 0 : index
    %c0_4 = arith.constant 0 : index
    %3 = vector.load %arg2[%c0_3, %c0_4] : memref<1x512xf32, #tpu.memory_space<vmem>>, vector<1x512xf32>
    %c0_5 = arith.constant 0 : index
    %c0_6 = arith.constant 0 : index
    %4 = vector.load %arg3[%c0_5, %c0_6] : memref<1x512xf32, #tpu.memory_space<vmem>>, vector<1x512xf32>
    %cst_7 = arith.constant dense<0.000000e+00> : vector<512xf32>
    %5 = vector.multi_reduction <add>, %2, %cst_7 [0] : vector<8x512xf32> to vector<512xf32>
    %6 = vector.shape_cast %5 : vector<512xf32> to vector<1x512xf32>
    %cst_8 = arith.constant 1.250000e-01 : f32
    %7 = vector.broadcast %cst_8 : f32 to vector<1x512xf32>
    %8 = arith.mulf %6, %7 : vector<1x512xf32>
    %9 = arith.mulf %2, %2 : vector<8x512xf32>
    %cst_9 = arith.constant dense<0.000000e+00> : vector<512xf32>
    %10 = vector.multi_reduction <add>, %9, %cst_9 [0] : vector<8x512xf32> to vector<512xf32>
    %11 = vector.shape_cast %10 : vector<512xf32> to vector<1x512xf32>
    %cst_10 = arith.constant 1.250000e-01 : f32
    %12 = vector.broadcast %cst_10 : f32 to vector<1x512xf32>
    %13 = arith.mulf %11, %12 : vector<1x512xf32>
    %14 = arith.mulf %8, %8 : vector<1x512xf32>
    %15 = arith.subf %13, %14 : vector<1x512xf32>
    %cst_11 = arith.constant 0.000000e+00 : f32
    %16 = vector.broadcast %cst_11 : f32 to vector<1x512xf32>
    %17 = arith.maximumf %15, %16 : vector<1x512xf32>
    %cst_12 = arith.constant 9.99999974E-6 : f32
    %18 = vector.broadcast %cst_12 : f32 to vector<1x512xf32>
    %19 = arith.addf %17, %18 : vector<1x512xf32>
    %20 = math.rsqrt %19 : vector<1x512xf32>
    %21 = arith.mulf %3, %20 : vector<1x512xf32>
    %22 = arith.mulf %8, %21 : vector<1x512xf32>
    %23 = arith.subf %4, %22 : vector<1x512xf32>
    %24 = vector.broadcast %21 : vector<1x512xf32> to vector<8x512xf32>
    %25 = arith.mulf %2, %24 : vector<8x512xf32>
    %26 = vector.broadcast %23 : vector<1x512xf32> to vector<8x512xf32>
    %27 = arith.addf %25, %26 : vector<8x512xf32>
    %cst_13 = arith.constant 0.000000e+00 : f32
    %28 = vector.broadcast %cst_13 : f32 to vector<8x512xf32>
    %29 = arith.maximumf %27, %28 : vector<8x512xf32>
    %30 = arith.truncf %29 : vector<8x512xf32> to vector<8x512xbf16>
    %c0_14 = arith.constant 0 : index
    %c0_15 = arith.constant 0 : index
    %31 = vector.load %arg4[%c0_14, %c0_15] : memref<512x256xbf16, #tpu.memory_space<vmem>>, vector<512x256xbf16>
    %cst_16 = arith.constant dense<0.000000e+00> : vector<8x256xf32>
    %32 = tpu.matmul %30, %31, %cst_16 {dimension_numbers = #tpu.dot_dimension_numbers<[1], [0], [0], [1], [0, 0, 1, 1], [], []>} : vector<8x512xbf16>, vector<512x256xbf16>, vector<8x256xf32> -> vector<8x256xf32>
    %c0_17 = arith.constant 0 : index
    %c0_18 = arith.constant 0 : index
    %33 = vector.load %arg5[%c0_17, %c0_18] : memref<1x256xf32, #tpu.memory_space<vmem>>, vector<1x256xf32>
    %c0_19 = arith.constant 0 : index
    %c0_20 = arith.constant 0 : index
    %34 = vector.load %arg6[%c0_19, %c0_20] : memref<1x256xf32, #tpu.memory_space<vmem>>, vector<1x256xf32>
    %cst_21 = arith.constant dense<0.000000e+00> : vector<256xf32>
    %35 = vector.multi_reduction <add>, %32, %cst_21 [0] : vector<8x256xf32> to vector<256xf32>
    %36 = vector.shape_cast %35 : vector<256xf32> to vector<1x256xf32>
    %cst_22 = arith.constant 1.250000e-01 : f32
    %37 = vector.broadcast %cst_22 : f32 to vector<1x256xf32>
    %38 = arith.mulf %36, %37 : vector<1x256xf32>
    %39 = arith.mulf %32, %32 : vector<8x256xf32>
    %cst_23 = arith.constant dense<0.000000e+00> : vector<256xf32>
    %40 = vector.multi_reduction <add>, %39, %cst_23 [0] : vector<8x256xf32> to vector<256xf32>
    %41 = vector.shape_cast %40 : vector<256xf32> to vector<1x256xf32>
    %cst_24 = arith.constant 1.250000e-01 : f32
    %42 = vector.broadcast %cst_24 : f32 to vector<1x256xf32>
    %43 = arith.mulf %41, %42 : vector<1x256xf32>
    %44 = arith.mulf %38, %38 : vector<1x256xf32>
    %45 = arith.subf %43, %44 : vector<1x256xf32>
    %cst_25 = arith.constant 0.000000e+00 : f32
    %46 = vector.broadcast %cst_25 : f32 to vector<1x256xf32>
    %47 = arith.maximumf %45, %46 : vector<1x256xf32>
    %cst_26 = arith.constant 9.99999974E-6 : f32
    %48 = vector.broadcast %cst_26 : f32 to vector<1x256xf32>
    %49 = arith.addf %47, %48 : vector<1x256xf32>
    %50 = math.rsqrt %49 : vector<1x256xf32>
    %51 = arith.mulf %33, %50 : vector<1x256xf32>
    %52 = arith.mulf %38, %51 : vector<1x256xf32>
    %53 = arith.subf %34, %52 : vector<1x256xf32>
    %54 = vector.broadcast %51 : vector<1x256xf32> to vector<8x256xf32>
    %55 = arith.mulf %32, %54 : vector<8x256xf32>
    %56 = vector.broadcast %53 : vector<1x256xf32> to vector<8x256xf32>
    %57 = arith.addf %55, %56 : vector<8x256xf32>
    %cst_27 = arith.constant 0.000000e+00 : f32
    %58 = vector.broadcast %cst_27 : f32 to vector<8x256xf32>
    %59 = arith.maximumf %57, %58 : vector<8x256xf32>
    %60 = arith.truncf %59 : vector<8x256xf32> to vector<8x256xbf16>
    %c0_28 = arith.constant 0 : index
    %c0_29 = arith.constant 0 : index
    %61 = vector.load %arg7[%c0_28, %c0_29] : memref<256x128xbf16, #tpu.memory_space<vmem>>, vector<256x128xbf16>
    %cst_30 = arith.constant dense<0.000000e+00> : vector<8x128xf32>
    %62 = tpu.matmul %60, %61, %cst_30 {dimension_numbers = #tpu.dot_dimension_numbers<[1], [0], [0], [1], [0, 0, 1, 1], [], []>} : vector<8x256xbf16>, vector<256x128xbf16>, vector<8x128xf32> -> vector<8x128xf32>
    %c0_31 = arith.constant 0 : index
    %c0_32 = arith.constant 0 : index
    %63 = vector.load %arg8[%c0_31, %c0_32] : memref<1x128xf32, #tpu.memory_space<vmem>>, vector<1x128xf32>
    %c0_33 = arith.constant 0 : index
    %c0_34 = arith.constant 0 : index
    %64 = vector.load %arg9[%c0_33, %c0_34] : memref<1x128xf32, #tpu.memory_space<vmem>>, vector<1x128xf32>
    %cst_35 = arith.constant dense<0.000000e+00> : vector<128xf32>
    %65 = vector.multi_reduction <add>, %62, %cst_35 [0] : vector<8x128xf32> to vector<128xf32>
    %66 = vector.shape_cast %65 : vector<128xf32> to vector<1x128xf32>
    %cst_36 = arith.constant 1.250000e-01 : f32
    %67 = vector.broadcast %cst_36 : f32 to vector<1x128xf32>
    %68 = arith.mulf %66, %67 : vector<1x128xf32>
    %69 = arith.mulf %62, %62 : vector<8x128xf32>
    %cst_37 = arith.constant dense<0.000000e+00> : vector<128xf32>
    %70 = vector.multi_reduction <add>, %69, %cst_37 [0] : vector<8x128xf32> to vector<128xf32>
    %71 = vector.shape_cast %70 : vector<128xf32> to vector<1x128xf32>
    %cst_38 = arith.constant 1.250000e-01 : f32
    %72 = vector.broadcast %cst_38 : f32 to vector<1x128xf32>
    %73 = arith.mulf %71, %72 : vector<1x128xf32>
    %74 = arith.mulf %68, %68 : vector<1x128xf32>
    %75 = arith.subf %73, %74 : vector<1x128xf32>
    %cst_39 = arith.constant 0.000000e+00 : f32
    %76 = vector.broadcast %cst_39 : f32 to vector<1x128xf32>
    %77 = arith.maximumf %75, %76 : vector<1x128xf32>
    %cst_40 = arith.constant 9.99999974E-6 : f32
    %78 = vector.broadcast %cst_40 : f32 to vector<1x128xf32>
    %79 = arith.addf %77, %78 : vector<1x128xf32>
    %80 = math.rsqrt %79 : vector<1x128xf32>
    %81 = arith.mulf %63, %80 : vector<1x128xf32>
    %82 = arith.mulf %68, %81 : vector<1x128xf32>
    %83 = arith.subf %64, %82 : vector<1x128xf32>
    %84 = vector.broadcast %81 : vector<1x128xf32> to vector<8x128xf32>
    %85 = arith.mulf %62, %84 : vector<8x128xf32>
    %86 = vector.broadcast %83 : vector<1x128xf32> to vector<8x128xf32>
    %87 = arith.addf %85, %86 : vector<8x128xf32>
    %cst_41 = arith.constant 0.000000e+00 : f32
    %88 = vector.broadcast %cst_41 : f32 to vector<8x128xf32>
    %89 = arith.maximumf %87, %88 : vector<8x128xf32>
    %90 = arith.truncf %89 : vector<8x128xf32> to vector<8x128xbf16>
    %c0_42 = arith.constant 0 : index
    %c0_43 = arith.constant 0 : index
    %91 = vector.load %arg10[%c0_42, %c0_43] : memref<128x128xbf16, #tpu.memory_space<vmem>>, vector<128x128xbf16>
    %cst_44 = arith.constant dense<0.000000e+00> : vector<8x128xf32>
    %92 = tpu.matmul %90, %91, %cst_44 {dimension_numbers = #tpu.dot_dimension_numbers<[1], [0], [0], [1], [0, 0, 1, 1], [], []>} : vector<8x128xbf16>, vector<128x128xbf16>, vector<8x128xf32> -> vector<8x128xf32>
    %c0_45 = arith.constant 0 : index
    %c0_46 = arith.constant 0 : index
    %93 = vector.load %arg11[%c0_45, %c0_46] : memref<1x128xf32, #tpu.memory_space<vmem>>, vector<1x128xf32>
    %94 = vector.broadcast %93 : vector<1x128xf32> to vector<8x128xf32>
    %95 = arith.addf %92, %94 : vector<8x128xf32>
    %cst_47 = arith.constant dense<0xFF800000> : vector<8xf32>
    %96 = vector.multi_reduction <maximumf>, %95, %cst_47 [1] : vector<8x128xf32> to vector<8xf32>
    %97 = vector.shape_cast %96 : vector<8xf32> to vector<8x1xf32>
    %98 = vector.broadcast %97 : vector<8x1xf32> to vector<8x128xf32>
    %99 = arith.subf %95, %98 : vector<8x128xf32>
    %100 = math.exp %99 : vector<8x128xf32>
    %cst_48 = arith.constant dense<0.000000e+00> : vector<8xf32>
    %101 = vector.multi_reduction <add>, %100, %cst_48 [1] : vector<8x128xf32> to vector<8xf32>
    %102 = vector.shape_cast %101 : vector<8xf32> to vector<8x1xf32>
    %103 = vector.broadcast %102 : vector<8x1xf32> to vector<8x128xf32>
    %104 = arith.divf %100, %103 : vector<8x128xf32>
    %c0_49 = arith.constant 0 : index
    %c0_50 = arith.constant 0 : index
    %105 = vector.load %arg12[%c0_49, %c0_50] : memref<8x128xf32, #tpu.memory_space<vmem>>, vector<8x128xf32>
    tpu.vector_store %arg12[%c0_49, %c0_50], %104 {strides = array<i32>} : memref<8x128xf32, #tpu.memory_space<vmem>>, vector<8x128xf32>,
    return
  }
}

</mosaic_0001>

<llo_original>
// kernel: net_forward.1
$region0: #{net_forward.1}
  #allocation0 [shape = 'u32[]', space=smem, size = 0x4, offset = 0x4, fixed_abs, tag = 'smem constant byte address 0x4 - core index']
  #allocation1 [shape = 'u32[144,128]{1,0:T(1,128)}', space=vmem, size = 0x12000, scoped, tag = 'internal scratch']
  %s0 = inlined_call_operand.vmem [shape: bf16[8,896], index: 0, kind: input, shape index: {}]
  %s1 = inlined_call_operand.hbm [shape: bf16[896,512], index: 1, kind: input, shape index: {}]
  %s2 = inlined_call_operand.vmem [shape: f32[1,512], index: 2, kind: input, shape index: {}]
  %s3 = inlined_call_operand.vmem [shape: f32[1,512], index: 3, kind: input, shape index: {}]
  %s4 = inlined_call_operand.vmem [shape: bf16[512,256], index: 4, kind: input, shape index: {}]
  %s5 = inlined_call_operand.vmem [shape: f32[1,256], index: 5, kind: input, shape index: {}]
  %s6 = inlined_call_operand.vmem [shape: f32[1,256], index: 6, kind: input, shape index: {}]
  %s7 = inlined_call_operand.hbm [shape: bf16[256,128], index: 7, kind: input, shape index: {}]
  %s8 = inlined_call_operand.vmem [shape: f32[1,128], index: 8, kind: input, shape index: {}]
  %s9 = inlined_call_operand.vmem [shape: f32[1,128], index: 9, kind: input, shape index: {}]
  %s10 = inlined_call_operand.vmem [shape: bf16[128,128], index: 10, kind: input, shape index: {}]
  %s11 = inlined_call_operand.vmem [shape: f32[1,128], index: 11, kind: input, shape index: {}]
  %s12 = inlined_call_operand.hbm [shape: f32[8,128], index: 12, kind: output, shape index: {}]
  %s13 = sld [smem:[#allocation0]]
  $region66: #{net_forward.1} parent=0
    _
  %s15 = ssub.s32 1, %s13
  %s16 = scalar_select 0, %s15, %s13
  $region1: #{net_forward.1} parent=0
    #allocation2 [shape = 'u8[917504]{0}', space=vmem, size = 0xe0000, scoped, tag = 'input window, operand 1, single buffered']
    #allocation3 [shape = 's32[1]{0}', space=sflag, size = 0x4, scoped, tag = 'scoped memory for net_forward.1']
    #allocation4 [shape = 's32[1]{0}', space=sflag, size = 0x4, scoped, tag = 'scoped memory for net_forward.1']
    #allocation5 [shape = 'u8[65536]{0}', space=vmem, size = 0x10000, scoped, tag = 'input window, operand 7, single buffered']
    #allocation6 [shape = 's32[1]{0}', space=sflag, size = 0x4, scoped, tag = 'scoped memory for net_forward.1']
    #allocation7 [shape = 'u8[4096]{0}', space=vmem, size = 0x1000, scoped, tag = 'output window, operand 0, single buffered']
    %17 = vsyncpa [#allocation3], 0
    %18 = vsyncpa [#allocation6], 0
    %19 = vsyncpa [#allocation4], 0
    // Predicated region
    $region2: #{net_forward.1} parent=1 // pred_check
      _
    $region3: #{net_forward.1} parent=1 // pred_check_branch
      %21 = sbr.rel (0) target = $region5
    $region4: #{net_forward.1} parent=1 // pred_region
      _
    $region5: #{net_forward.1} parent=1 // pred_fallthru
      _
    // Predicated region
    $region6: #{net_forward.1} parent=1 // pred_check
      _
    $region7: #{net_forward.1} parent=1 // pred_check_branch
      %23 = sbr.rel (0) target = $region9
    $region8: #{net_forward.1} parent=1 // pred_region
      %s25 = ssub.s32 28672, 28672
      %26 = vsyncadd [#allocation3], %s25
      %s27 = sshll.u32 [#allocation2], 4
      %s28 = int_to_ptr.vmem [resolvable:$true] %s27
      %33 = dma.hbm_to_vmem [thread:$0]  %s1, 28672, %s28, [#allocation3], 256, 256, 16
    $region9: #{net_forward.1} parent=1 // pred_fallthru
      _
    // Predicated region
    $region10: #{net_forward.1} parent=1 // pred_check
      _
    $region11: #{net_forward.1} parent=1 // pred_check_branch
      %35 = sbr.rel (0) target = $region13
    $region12: #{net_forward.1} parent=1 // pred_region
      _
    $region13: #{net_forward.1} parent=1 // pred_fallthru
      _
    // Predicated region
    $region14: #{net_forward.1} parent=1 // pred_check
      _
    $region15: #{net_forward.1} parent=1 // pred_check_branch
      %37 = sbr.rel (0) target = $region17
    $region16: #{net_forward.1} parent=1 // pred_region
      _
    $region17: #{net_forward.1} parent=1 // pred_fallthru
      _
    // Predicated region
    $region18: #{net_forward.1} parent=1 // pred_check
      _
    $region19: #{net_forward.1} parent=1 // pred_check_branch
      %39 = sbr.rel (0) target = $region21
    $region20: #{net_forward.1} parent=1 // pred_region
      _
    $region21: #{net_forward.1} parent=1 // pred_fallthru
      _
    // Predicated region
    $region22: #{net_forward.1} parent=1 // pred_check
      _
    $region23: #{net_forward.1} parent=1 // pred_check_branch
      %41 = sbr.rel (0) target = $region25
    $region24: #{net_forward.1} parent=1 // pred_region
      _
    $region25: #{net_forward.1} parent=1 // pred_fallthru
      _
    // Predicated region
    $region26: #{net_forward.1} parent=1 // pred_check
      _
    $region27: #{net_forward.1} parent=1 // pred_check_branch
      %43 = sbr.rel (0) target = $region29
    $region28: #{net_forward.1} parent=1 // pred_region
      _
    $region29: #{net_forward.1} parent=1 // pred_fallthru
      _
    // Predicated region
    $region30: #{net_forward.1} parent=1 // pred_check
      _
    $region31: #{net_forward.1} parent=1 // pred_check_branch
      %45 = sbr.rel (0) target = $region33
    $region32: #{net_forward.1} parent=1 // pred_region
      %s47 = ssub.s32 2048, 2048
      %48 = vsyncadd [#allocation6], %s47
      %s49 = sshll.u32 [#allocation5], 4
      %s50 = int_to_ptr.vmem [resolvable:$true] %s49
      %55 = dma.hbm_to_vmem [thread:$0]  %s7, 2048, %s50, [#allocation6], 64, 64, 4
    $region33: #{net_forward.1} parent=1 // pred_fallthru
      _
    // Predicated region
    $region34: #{net_forward.1} parent=1 // pred_check
      _
    $region35: #{net_forward.1} parent=1 // pred_check_branch
      %57 = sbr.rel (0) target = $region37
    $region36: #{net_forward.1} parent=1 // pred_region
      _
    $region37: #{net_forward.1} parent=1 // pred_fallthru
      _
    // Predicated region
    $region38: #{net_forward.1} parent=1 // pred_check
      _
    $region39: #{net_forward.1} parent=1 // pred_check_branch
      %59 = sbr.rel (0) target = $region41
    $region40: #{net_forward.1} parent=1 // pred_region
      _
    $region41: #{net_forward.1} parent=1 // pred_fallthru
      _
    // Predicated region
    $region42: #{net_forward.1} parent=1 // pred_check
      _
    $region43: #{net_forward.1} parent=1 // pred_check_branch
      %61 = sbr.rel (0) target = $region45
    $region44: #{net_forward.1} parent=1 // pred_region
      _
    $region45: #{net_forward.1} parent=1 // pred_fallthru
      _
    // Predicated region
    $region46: #{net_forward.1} parent=1 // pred_check
      _
    $region47: #{net_forward.1} parent=1 // pred_check_branch
      %63 = sbr.rel (0) target = $region49
    $region48: #{net_forward.1} parent=1 // pred_region
      _
    $region49: #{net_forward.1} parent=1 // pred_fallthru
      _
    // Predicated region
    $region50: #{net_forward.1} parent=1 // pred_check
      _
    $region51: #{net_forward.1} parent=1 // pred_check_branch
      %65 = sbr.rel (0) target = $region53
    $region52: #{net_forward.1} parent=1 // pred_region
      %66 = dma.done [#allocation3], 28672
    $region53: #{net_forward.1} parent=1 // pred_fallthru
      _
    // Predicated region
    $region54: #{net_forward.1} parent=1 // pred_check
      _
    $region55: #{net_forward.1} parent=1 // pred_check_branch
      %68 = sbr.rel (0) target = $region57
    $region56: #{net_forward.1} parent=1 // pred_region
      %69 = dma.done [#allocation6], 2048
    $region57: #{net_forward.1} parent=1 // pred_fallthru
      _
    %v71 = vld [vmem:[%s0] sm:$0xff]
    %v72 = vld [vmem:[%s0 + $0x8] sm:$0xff]
    %v73 = vld [vmem:[%s0 + $0x10] sm:$0xff]
    %v74 = vld [vmem:[%s0 + $0x18] sm:$0xf]
    %v75 = vld [vmem:[#allocation2] sm:$0xff]
    %v76 = vld [vmem:[#allocation2 + $0x8] sm:$0xff]
    %v77 = vld [vmem:[#allocation2 + $0x10] sm:$0xff]
    %v78 = vld [vmem:[#allocation2 + $0x18] sm:$0xff]
    %v79 = vld [vmem:[#allocation2 + $0x20] sm:$0xff]
    %v80 = vld [vmem:[#allocation2 + $0x28] sm:$0xff]
    %v81 = vld [vmem:[#allocation2 + $0x30] sm:$0xff]
    %v82 = vld [vmem:[#allocation2 + $0x38] sm:$0xff]
    %v83 = vld [vmem:[#allocation2 + $0x40] sm:$0xff]
    %v84 = vld [vmem:[#allocation2 + $0x48] sm:$0xff]
    %v85 = vld [vmem:[#allocation2 + $0x50] sm:$0xff]
    %v86 = vld [vmem:[#allocation2 + $0x58] sm:$0xff]
    %v87 = vld [vmem:[#allocation2 + $0x60] sm:$0xff]
    %v88 = vld [vmem:[#allocation2 + $0x68] sm:$0xff]
    %v89 = vld [vmem:[#allocation2 + $0x70] sm:$0xff]
    %v90 = vld [vmem:[#allocation2 + $0x78] sm:$0xff]
    %v91 = vld [vmem:[#allocation2 + $0x80] sm:$0xff]
    %v92 = vld [vmem:[#allocation2 + $0x88] sm:$0xff]
    %v93 = vld [vmem:[#allocation2 + $0x90] sm:$0xff]
    %v94 = vld [vmem:[#allocation2 + $0x98] sm:$0xff]
    %v95 = vld [vmem:[#allocation2 + $0xa0] sm:$0xff]
    %v96 = vld [vmem:[#allocation2 + $0xa8] sm:$0xff]
    %v97 = vld [vmem:[#allocation2 + $0xb0] sm:$0xff]
    %v98 = vld [vmem:[#allocation2 + $0xb8] sm:$0xff]
    %v99 = vld [vmem:[#allocation2 + $0xc0] sm:$0xff]
    %v100 = vld [vmem:[#allocation2 + $0xc8] sm:$0xff]
    %v101 = vld [vmem:[#allocation2 + $0xd0] sm:$0xff]
    %v102 = vld [vmem:[#allocation2 + $0xd8] sm:$0xff]
    %v103 = vld [vmem:[#allocation2 + $0xe0] sm:$0xff]
    %v104 = vld [vmem:[#allocation2 + $0xe8] sm:$0xff]
    %v105 = vld [vmem:[#allocation2 + $0xf0] sm:$0xff]
    %v106 = vld [vmem:[#allocation2 + $0xf8] sm:$0xff]
    %v107 = vld [vmem:[#allocation2 + $0x100] sm:$0xff]
    %v108 = vld [vmem:[#allocation2 + $0x108] sm:$0xff]
    %v109 = vld [vmem:[#allocation2 + $0x110] sm:$0xff]
    %v110 = vld [vmem:[#allocation2 + $0x118] sm:$0xff]
    %v111 = vld [vmem:[#allocation2 + $0x120] sm:$0xff]
    %v112 = vld [vmem:[#allocation2 + $0x128] sm:$0xff]
    %v113 = vld [vmem:[#allocation2 + $0x130] sm:$0xff]
    %v114 = vld [vmem:[#allocation2 + $0x138] sm:$0xff]
    %v115 = vld [vmem:[#allocation2 + $0x140] sm:$0xff]
    %v116 = vld [vmem:[#allocation2 + $0x148] sm:$0xff]
    %v117 = vld [vmem:[#allocation2 + $0x150] sm:$0xff]
    %v118 = vld [vmem:[#allocation2 + $0x158] sm:$0xff]
    %v119 = vld [vmem:[#allocation2 + $0x160] sm:$0xff]
    %v120 = vld [vmem:[#allocation2 + $0x168] sm:$0xff]
    %v121 = vld [vmem:[#allocation2 + $0x170] sm:$0xff]
    %v122 = vld [vmem:[#allocation2 + $0x178] sm:$0xff]
    %v123 = vld [vmem:[#allocation2 + $0x180] sm:$0xff]
    %v124 = vld [vmem:[#allocation2 + $0x188] sm:$0xff]
    %v125 = vld [vmem:[#allocation2 + $0x190] sm:$0xff]
    %v126 = vld [vmem:[#allocation2 + $0x198] sm:$0xff]
    %v127 = vld [vmem:[#allocation2 + $0x1a0] sm:$0xff]
    %v128 = vld [vmem:[#allocation2 + $0x1a8] sm:$0xff]
    %v129 = vld [vmem:[#allocation2 + $0x1b0] sm:$0xff]
    %v130 = vld [vmem:[#allocation2 + $0x1b8] sm:$0xff]
    %v131 = vld [vmem:[#allocation2 + $0x1c0] sm:$0xff]
    %v132 = vld [vmem:[#allocation2 + $0x1c8] sm:$0xff]
    %v133 = vld [vmem:[#allocation2 + $0x1d0] sm:$0xff]
    %v134 = vld [vmem:[#allocation2 + $0x1d8] sm:$0xff]
    %v135 = vld [vmem:[#allocation2 + $0x1e0] sm:$0xff]
    %v136 = vld [vmem:[#allocation2 + $0x1e8] sm:$0xff]
    %v137 = vld [vmem:[#allocation2 + $0x1f0] sm:$0xff]
    %v138 = vld [vmem:[#allocation2 + $0x1f8] sm:$0xff]
    %v139 = vld [vmem:[#allocation2 + $0x200] sm:$0xff]
    %v140 = vld [vmem:[#allocation2 + $0x208] sm:$0xff]
    %v141 = vld [vmem:[#allocation2 + $0x210] sm:$0xff]
    %v142 = vld [vmem:[#allocation2 + $0x218] sm:$0xff]
    %v143 = vld [vmem:[#allocation2 + $0x220] sm:$0xff]
    %v144 = vld [vmem:[#allocation2 + $0x228] sm:$0xff]
    %v145 = vld [vmem:[#allocation2 + $0x230] sm:$0xff]
    %v146 = vld [vmem:[#allocation2 + $0x238] sm:$0xff]
    %v147 = vld [vmem:[#allocation2 + $0x240] sm:$0xff]
    %v148 = vld [vmem:[#allocation2 + $0x248] sm:$0xff]
    %v149 = vld [vmem:[#allocation2 + $0x250] sm:$0xff]
    %v150 = vld [vmem:[#allocation2 + $0x258] sm:$0xff]
    %v151 = vld [vmem:[#allocation2 + $0x260] sm:$0xff]
    %v152 = vld [vmem:[#allocation2 + $0x268] sm:$0xff]
    %v153 = vld [vmem:[#allocation2 + $0x270] sm:$0xff]
    %v154 = vld [vmem:[#allocation2 + $0x278] sm:$0xff]
    %v155 = vld [vmem:[#allocation2 + $0x280] sm:$0xff]
    %v156 = vld [vmem:[#allocation2 + $0x288] sm:$0xff]
    %v157 = vld [vmem:[#allocation2 + $0x290] sm:$0xff]
    %v158 = vld [vmem:[#allocation2 + $0x298] sm:$0xff]
    %v159 = vld [vmem:[#allocation2 + $0x2a0] sm:$0xff]
    %v160 = vld [vmem:[#allocation2 + $0x2a8] sm:$0xff]
    %v161 = vld [vmem:[#allocation2 + $0x2b0] sm:$0xff]
    %v162 = vld [vmem:[#allocation2 + $0x2b8] sm:$0xff]
    %v163 = vld [vmem:[#allocation2 + $0x2c0] sm:$0xff]
    %v164 = vld [vmem:[#allocation2 + $0x2c8] sm:$0xff]
    %v165 = vld [vmem:[#allocation2 + $0x2d0] sm:$0xff]
    %v166 = vld [vmem:[#allocation2 + $0x2d8] sm:$0xff]
    %v167 = vld [vmem:[#allocation2 + $0x2e0] sm:$0xff]
    %v168 = vld [vmem:[#allocation2 + $0x2e8] sm:$0xff]
    %v169 = vld [vmem:[#allocation2 + $0x2f0] sm:$0xff]
    %v170 = vld [vmem:[#allocation2 + $0x2f8] sm:$0xff]
    %v171 = vld [vmem:[#allocation2 + $0x300] sm:$0xff]
    %v172 = vld [vmem:[#allocation2 + $0x308] sm:$0xff]
    %v173 = vld [vmem:[#allocation2 + $0x310] sm:$0xff]
    %v174 = vld [vmem:[#allocation2 + $0x318] sm:$0xff]
    %v175 = vld [vmem:[#allocation2 + $0x320] sm:$0xff]
    %v176 = vld [vmem:[#allocation2 + $0x328] sm:$0xff]
    %v177 = vld [vmem:[#allocation2 + $0x330] sm:$0xff]
    %v178 = vld [vmem:[#allocation2 + $0x338] sm:$0xff]
    %v179 = vld [vmem:[#allocation2 + $0x340] sm:$0xff]
    %v180 = vld [vmem:[#allocation2 + $0x348] sm:$0xff]
    %v181 = vld [vmem:[#allocation2 + $0x350] sm:$0xff]
    %v182 = vld [vmem:[#allocation2 + $0x358] sm:$0xff]
    %v183 = vld [vmem:[#allocation2 + $0x360] sm:$0xff]
    %v184 = vld [vmem:[#allocation2 + $0x368] sm:$0xff]
    %v185 = vld [vmem:[#allocation2 + $0x370] sm:$0xff]
    %v186 = vld [vmem:[#allocation2 + $0x378] sm:$0xff]
    %v187 = vld [vmem:[#allocation2 + $0x380] sm:$0xff]
    %v188 = vld [vmem:[#allocation2 + $0x388] sm:$0xff]
    %v189 = vld [vmem:[#allocation2 + $0x390] sm:$0xff]
    %v190 = vld [vmem:[#allocation2 + $0x398] sm:$0xff]
    %v191 = vld [vmem:[#allocation2 + $0x3a0] sm:$0xff]
    %v192 = vld [vmem:[#allocation2 + $0x3a8] sm:$0xff]
    %v193 = vld [vmem:[#allocation2 + $0x3b0] sm:$0xff]
    %v194 = vld [vmem:[#allocation2 + $0x3b8] sm:$0xff]
    %v195 = vld [vmem:[#allocation2 + $0x3c0] sm:$0xff]
    %v196 = vld [vmem:[#allocation2 + $0x3c8] sm:$0xff]
    %v197 = vld [vmem:[#allocation2 + $0x3d0] sm:$0xff]
    %v198 = vld [vmem:[#allocation2 + $0x3d8] sm:$0xff]
    %v199 = vld [vmem:[#allocation2 + $0x3e0] sm:$0xff]
    %v200 = vld [vmem:[#allocation2 + $0x3e8] sm:$0xff]
    %v201 = vld [vmem:[#allocation2 + $0x3f0] sm:$0xff]
    %v202 = vld [vmem:[#allocation2 + $0x3f8] sm:$0xff]
    %v203 = vld [vmem:[#allocation2 + $0x400] sm:$0xff]
    %v204 = vld [vmem:[#allocation2 + $0x408] sm:$0xff]
    %v205 = vld [vmem:[#allocation2 + $0x410] sm:$0xff]
    %v206 = vld [vmem:[#allocation2 + $0x418] sm:$0xff]
    %v207 = vld [vmem:[#allocation2 + $0x420] sm:$0xff]
    %v208 = vld [vmem:[#allocation2 + $0x428] sm:$0xff]
    %v209 = vld [vmem:[#allocation2 + $0x430] sm:$0xff]
    %v210 = vld [vmem:[#allocation2 + $0x438] sm:$0xff]
    %v211 = vld [vmem:[#allocation2 + $0x440] sm:$0xff]
    %v212 = vld [vmem:[#allocation2 + $0x448] sm:$0xff]
    %v213 = vld [vmem:[#allocation2 + $0x450] sm:$0xff]
    %v214 = vld [vmem:[#allocation2 + $0x458] sm:$0xff]
    %v215 = vld [vmem:[#allocation2 + $0x460] sm:$0xff]
    %v216 = vld [vmem:[#allocation2 + $0x468] sm:$0xff]
    %v217 = vld [vmem:[#allocation2 + $0x470] sm:$0xff]
    %v218 = vld [vmem:[#allocation2 + $0x478] sm:$0xff]
    %v219 = vld [vmem:[#allocation2 + $0x480] sm:$0xff]
    %v220 = vld [vmem:[#allocation2 + $0x488] sm:$0xff]
    %v221 = vld [vmem:[#allocation2 + $0x490] sm:$0xff]
    %v222 = vld [vmem:[#allocation2 + $0x498] sm:$0xff]
    %v223 = vld [vmem:[#allocation2 + $0x4a0] sm:$0xff]
    %v224 = vld [vmem:[#allocation2 + $0x4a8] sm:$0xff]
    %v225 = vld [vmem:[#allocation2 + $0x4b0] sm:$0xff]
    %v226 = vld [vmem:[#allocation2 + $0x4b8] sm:$0xff]
    %v227 = vld [vmem:[#allocation2 + $0x4c0] sm:$0xff]
    %v228 = vld [vmem:[#allocation2 + $0x4c8] sm:$0xff]
    %v229 = vld [vmem:[#allocation2 + $0x4d0] sm:$0xff]
    %v230 = vld [vmem:[#allocation2 + $0x4d8] sm:$0xff]
    %v231 = vld [vmem:[#allocation2 + $0x4e0] sm:$0xff]
    %v232 = vld [vmem:[#allocation2 + $0x4e8] sm:$0xff]
    %v233 = vld [vmem:[#allocation2 + $0x4f0] sm:$0xff]
    %v234 = vld [vmem:[#allocation2 + $0x4f8] sm:$0xff]
    %v235 = vld [vmem:[#allocation2 + $0x500] sm:$0xff]
    %v236 = vld [vmem:[#allocation2 + $0x508] sm:$0xff]
    %v237 = vld [vmem:[#allocation2 + $0x510] sm:$0xff]
    %v238 = vld [vmem:[#allocation2 + $0x518] sm:$0xff]
    %v239 = vld [vmem:[#allocation2 + $0x520] sm:$0xff]
    %v240 = vld [vmem:[#allocation2 + $0x528] sm:$0xff]
    %v241 = vld [vmem:[#allocation2 + $0x530] sm:$0xff]
    %v242 = vld [vmem:[#allocation2 + $0x538] sm:$0xff]
    %v243 = vld [vmem:[#allocation2 + $0x540] sm:$0xff]
    %v244 = vld [vmem:[#allocation2 + $0x548] sm:$0xff]
    %v245 = vld [vmem:[#allocation2 + $0x550] sm:$0xff]
    %v246 = vld [vmem:[#allocation2 + $0x558] sm:$0xff]
    %v247 = vld [vmem:[#allocation2 + $0x560] sm:$0xff]
    %v248 = vld [vmem:[#allocation2 + $0x568] sm:$0xff]
    %v249 = vld [vmem:[#allocation2 + $0x570] sm:$0xff]
    %v250 = vld [vmem:[#allocation2 + $0x578] sm:$0xff]
    %v251 = vld [vmem:[#allocation2 + $0x580] sm:$0xff]
    %v252 = vld [vmem:[#allocation2 + $0x588] sm:$0xff]
    %v253 = vld [vmem:[#allocation2 + $0x590] sm:$0xff]
    %v254 = vld [vmem:[#allocation2 + $0x598] sm:$0xff]
    %v255 = vld [vmem:[#allocation2 + $0x5a0] sm:$0xff]
    %v256 = vld [vmem:[#allocation2 + $0x5a8] sm:$0xff]
    %v257 = vld [vmem:[#allocation2 + $0x5b0] sm:$0xff]
    %v258 = vld [vmem:[#allocation2 + $0x5b8] sm:$0xff]
    %v259 = vld [vmem:[#allocation2 + $0x5c0] sm:$0xff]
    %v260 = vld [vmem:[#allocation2 + $0x5c8] sm:$0xff]
    %v261 = vld [vmem:[#allocation2 + $0x5d0] sm:$0xff]
    %v262 = vld [vmem:[#allocation2 + $0x5d8] sm:$0xff]
    %v263 = vld [vmem:[#allocation2 + $0x5e0] sm:$0xff]
    %v264 = vld [vmem:[#allocation2 + $0x5e8] sm:$0xff]
    %v265 = vld [vmem:[#allocation2 + $0x5f0] sm:$0xff]
    %v266 = vld [vmem:[#allocation2 + $0x5f8] sm:$0xff]
    %v267 = vld [vmem:[#allocation2 + $0x600] sm:$0xff]
    %v268 = vld [vmem:[#allocation2 + $0x608] sm:$0xff]
    %v269 = vld [vmem:[#allocation2 + $0x610] sm:$0xff]
    %v270 = vld [vmem:[#allocation2 + $0x618] sm:$0xff]
    %v271 = vld [vmem:[#allocation2 + $0x620] sm:$0xff]
    %v272 = vld [vmem:[#allocation2 + $0x628] sm:$0xff]
    %v273 = vld [vmem:[#allocation2 + $0x630] sm:$0xff]
    %v274 = vld [vmem:[#allocation2 + $0x638] sm:$0xff]
    %v275 = vld [vmem:[#allocation2 + $0x640] sm:$0xff]
    %v276 = vld [vmem:[#allocation2 + $0x648] sm:$0xff]
    %v277 = vld [vmem:[#allocation2 + $0x650] sm:$0xff]
    %v278 = vld [vmem:[#allocation2 + $0x658] sm:$0xff]
    %v279 = vld [vmem:[#allocation2 + $0x660] sm:$0xff]
    %v280 = vld [vmem:[#allocation2 + $0x668] sm:$0xff]
    %v281 = vld [vmem:[#allocation2 + $0x670] sm:$0xff]
    %v282 = vld [vmem:[#allocation2 + $0x678] sm:$0xff]
    %v283 = vld [vmem:[#allocation2 + $0x680] sm:$0xff]
    %v284 = vld [vmem:[#allocation2 + $0x688] sm:$0xff]
    %v285 = vld [vmem:[#allocation2 + $0x690] sm:$0xff]
    %v286 = vld [vmem:[#allocation2 + $0x698] sm:$0xff]
    %v287 = vld [vmem:[#allocation2 + $0x6a0] sm:$0xff]
    %v288 = vld [vmem:[#allocation2 + $0x6a8] sm:$0xff]
    %v289 = vld [vmem:[#allocation2 + $0x6b0] sm:$0xff]
    %v290 = vld [vmem:[#allocation2 + $0x6b8] sm:$0xff]
    %v291 = vld [vmem:[#allocation2 + $0x6c0] sm:$0xff]
    %v292 = vld [vmem:[#allocation2 + $0x6c8] sm:$0xff]
    %v293 = vld [vmem:[#allocation2 + $0x6d0] sm:$0xff]
    %v294 = vld [vmem:[#allocation2 + $0x6d8] sm:$0xff]
    %v295 = vld [vmem:[#allocation2 + $0x6e0] sm:$0xff]
    %v296 = vld [vmem:[#allocation2 + $0x6e8] sm:$0xff]
    %v297 = vld [vmem:[#allocation2 + $0x6f0] sm:$0xff]
    %v298 = vld [vmem:[#allocation2 + $0x6f8] sm:$0xff]
    %v303 = vunpack.c.l.b16 %v71
    %v304 = vunpack.c.h.b16 %v71
    %v305 = vunpack.c.l.b16 %v72
    %v306 = vunpack.c.h.b16 %v72
    %v307 = vunpack.c.l.b16 %v73
    %v308 = vunpack.c.h.b16 %v73
    %v309 = vunpack.c.l.b16 %v74
    %v310 = vpack.c.b16 %v303, %v303
    %v311 = vpack.c.b16 %v304, %v304
    %v312 = vpack.c.b16 %v305, %v305
    %v313 = vpack.c.b16 %v306, %v306
    %v314 = vpack.c.b16 %v307, %v307
    %v315 = vpack.c.b16 %v308, %v308
    %v316 = vpack.c.b16 %v309, %v309
    %v548 = vunpack.c.l.b16 %v75
    %v549 = vunpack.c.h.b16 %v75
    %v550 = vunpack.c.l.b16 %v76
    %v551 = vunpack.c.h.b16 %v76
    %v552 = vunpack.c.l.b16 %v77
    %v553 = vunpack.c.h.b16 %v77
    %v554 = vunpack.c.l.b16 %v78
    %v555 = vunpack.c.h.b16 %v78
    %v556 = vunpack.c.l.b16 %v79
    %v557 = vunpack.c.h.b16 %v79
    %v558 = vunpack.c.l.b16 %v80
    %v559 = vunpack.c.h.b16 %v80
    %v560 = vunpack.c.l.b16 %v81
    %v561 = vunpack.c.h.b16 %v81
    %v562 = vunpack.c.l.b16 %v82
    %v563 = vunpack.c.h.b16 %v82
    %v564 = vunpack.c.l.b16 %v83
    %v565 = vunpack.c.h.b16 %v83
    %v566 = vunpack.c.l.b16 %v84
    %v567 = vunpack.c.h.b16 %v84
    %v568 = vunpack.c.l.b16 %v85
    %v569 = vunpack.c.h.b16 %v85
    %v570 = vunpack.c.l.b16 %v86
    %v571 = vunpack.c.h.b16 %v86
    %v572 = vunpack.c.l.b16 %v87
    %v573 = vunpack.c.h.b16 %v87
    %v574 = vunpack.c.l.b16 %v88
    %v575 = vunpack.c.h.b16 %v88
    %v576 = vunpack.c.l.b16 %v89
    %v577 = vunpack.c.h.b16 %v89
    %v578 = vunpack.c.l.b16 %v90
    %v579 = vunpack.c.h.b16 %v90
    %v580 = vunpack.c.l.b16 %v91
    %v581 = vunpack.c.h.b16 %v91
    %v582 = vunpack.c.l.b16 %v92
    %v583 = vunpack.c.h.b16 %v92
    %v584 = vunpack.c.l.b16 %v93
    %v585 = vunpack.c.h.b16 %v93
    %v586 = vunpack.c.l.b16 %v94
    %v587 = vunpack.c.h.b16 %v94
    %v588 = vunpack.c.l.b16 %v95
    %v589 = vunpack.c.h.b16 %v95
    %v590 = vunpack.c.l.b16 %v96
    %v591 = vunpack.c.h.b16 %v96
    %v592 = vunpack.c.l.b16 %v97
    %v593 = vunpack.c.h.b16 %v97
    %v594 = vunpack.c.l.b16 %v98
    %v595 = vunpack.c.h.b16 %v98
    %v596 = vunpack.c.l.b16 %v99
    %v597 = vunpack.c.h.b16 %v99
    %v598 = vunpack.c.l.b16 %v100
    %v599 = vunpack.c.h.b16 %v100
    %v600 = vunpack.c.l.b16 %v101
    %v601 = vunpack.c.h.b16 %v101
    %v602 = vunpack.c.l.b16 %v102
    %v603 = vunpack.c.h.b16 %v102
    %v604 = vunpack.c.l.b16 %v103
    %v605 = vunpack.c.h.b16 %v103
    %v606 = vunpack.c.l.b16 %v104
    %v607 = vunpack.c.h.b16 %v104
    %v608 = vunpack.c.l.b16 %v105
    %v609 = vunpack.c.h.b16 %v105
    %v610 = vunpack.c.l.b16 %v106
    %v611 = vunpack.c.h.b16 %v106
    %v612 = vunpack.c.l.b16 %v107
    %v613 = vunpack.c.h.b16 %v107
    %v614 = vunpack.c.l.b16 %v108
    %v615 = vunpack.c.h.b16 %v108
    %v616 = vunpack.c.l.b16 %v109
    %v617 = vunpack.c.h.b16 %v109
    %v618 = vunpack.c.l.b16 %v110
    %v619 = vunpack.c.h.b16 %v110
    %v620 = vunpack.c.l.b16 %v111
    %v621 = vunpack.c.h.b16 %v111
    %v622 = vunpack.c.l.b16 %v112
    %v623 = vunpack.c.h.b16 %v112
    %v624 = vunpack.c.l.b16 %v113
    %v625 = vunpack.c.h.b16 %v113
    %v626 = vunpack.c.l.b16 %v114
    %v627 = vunpack.c.h.b16 %v114
    %v628 = vunpack.c.l.b16 %v115
    %v629 = vunpack.c.h.b16 %v115
    %v630 = vunpack.c.l.b16 %v116
    %v631 = vunpack.c.h.b16 %v116
    %v632 = vunpack.c.l.b16 %v117
    %v633 = vunpack.c.h.b16 %v117
    %v634 = vunpack.c.l.b16 %v118
    %v635 = vunpack.c.h.b16 %v118
    %v636 = vunpack.c.l.b16 %v119
    %v637 = vunpack.c.h.b16 %v119
    %v638 = vunpack.c.l.b16 %v120
    %v639 = vunpack.c.h.b16 %v120
    %v640 = vunpack.c.l.b16 %v121
    %v641 = vunpack.c.h.b16 %v121
    %v642 = vunpack.c.l.b16 %v122
    %v643 = vunpack.c.h.b16 %v122
    %v644 = vunpack.c.l.b16 %v123
    %v645 = vunpack.c.h.b16 %v123
    %v646 = vunpack.c.l.b16 %v124
    %v647 = vunpack.c.h.b16 %v124
    %v648 = vunpack.c.l.b16 %v125
    %v649 = vunpack.c.h.b16 %v125
    %v650 = vunpack.c.l.b16 %v126
    %v651 = vunpack.c.h.b16 %v126
    %v652 = vunpack.c.l.b16 %v127
    %v653 = vunpack.c.h.b16 %v127
    %v654 = vunpack.c.l.b16 %v128
    %v655 = vunpack.c.h.b16 %v128
    %v656 = vunpack.c.l.b16 %v129
    %v657 = vunpack.c.h.b16 %v129
    %v658 = vunpack.c.l.b16 %v130
    %v659 = vunpack.c.h.b16 %v130
    %v660 = vunpack.c.l.b16 %v131
    %v661 = vunpack.c.h.b16 %v131
    %v662 = vunpack.c.l.b16 %v132
    %v663 = vunpack.c.h.b16 %v132
    %v664 = vunpack.c.l.b16 %v133
    %v665 = vunpack.c.h.b16 %v133
    %v666 = vunpack.c.l.b16 %v134
    %v667 = vunpack.c.h.b16 %v134
    %v668 = vunpack.c.l.b16 %v135
    %v669 = vunpack.c.h.b16 %v135
    %v670 = vunpack.c.l.b16 %v136
    %v671 = vunpack.c.h.b16 %v136
    %v672 = vunpack.c.l.b16 %v137
    %v673 = vunpack.c.h.b16 %v137
    %v674 = vunpack.c.l.b16 %v138
    %v675 = vunpack.c.h.b16 %v138
    %v676 = vunpack.c.l.b16 %v139
    %v677 = vunpack.c.h.b16 %v139
    %v678 = vunpack.c.l.b16 %v140
    %v679 = vunpack.c.h.b16 %v140
    %v680 = vunpack.c.l.b16 %v141
    %v681 = vunpack.c.h.b16 %v141
    %v682 = vunpack.c.l.b16 %v142
    %v683 = vunpack.c.h.b16 %v142
    %v684 = vunpack.c.l.b16 %v143
    %v685 = vunpack.c.h.b16 %v143
    %v686 = vunpack.c.l.b16 %v144
    %v687 = vunpack.c.h.b16 %v144
    %v688 = vunpack.c.l.b16 %v145
    %v689 = vunpack.c.h.b16 %v145
    %v690 = vunpack.c.l.b16 %v146
    %v691 = vunpack.c.h.b16 %v146
    %v692 = vunpack.c.l.b16 %v147
    %v693 = vunpack.c.h.b16 %v147
    %v694 = vunpack.c.l.b16 %v148
    %v695 = vunpack.c.h.b16 %v148
    %v696 = vunpack.c.l.b16 %v149
    %v697 = vunpack.c.h.b16 %v149
    %v698 = vunpack.c.l.b16 %v150
    %v699 = vunpack.c.h.b16 %v150
    %v700 = vunpack.c.l.b16 %v151
    %v701 = vunpack.c.h.b16 %v151
    %v702 = vunpack.c.l.b16 %v152
    %v703 = vunpack.c.h.b16 %v152
    %v704 = vunpack.c.l.b16 %v153
    %v705 = vunpack.c.h.b16 %v153
    %v706 = vunpack.c.l.b16 %v154
    %v707 = vunpack.c.h.b16 %v154
    %v708 = vunpack.c.l.b16 %v155
    %v709 = vunpack.c.h.b16 %v155
    %v710 = vunpack.c.l.b16 %v156
    %v711 = vunpack.c.h.b16 %v156
    %v712 = vunpack.c.l.b16 %v157
    %v713 = vunpack.c.h.b16 %v157
    %v714 = vunpack.c.l.b16 %v158
    %v715 = vunpack.c.h.b16 %v158
    %v716 = vunpack.c.l.b16 %v159
    %v717 = vunpack.c.h.b16 %v159
    %v718 = vunpack.c.l.b16 %v160
    %v719 = vunpack.c.h.b16 %v160
    %v720 = vunpack.c.l.b16 %v161
    %v721 = vunpack.c.h.b16 %v161
    %v722 = vunpack.c.l.b16 %v162
    %v723 = vunpack.c.h.b16 %v162
    %v724 = vunpack.c.l.b16 %v163
    %v725 = vunpack.c.h.b16 %v163
    %v726 = vunpack.c.l.b16 %v164
    %v727 = vunpack.c.h.b16 %v164
    %v728 = vunpack.c.l.b16 %v165
    %v729 = vunpack.c.h.b16 %v165
    %v730 = vunpack.c.l.b16 %v166
    %v731 = vunpack.c.h.b16 %v166
    %v732 = vunpack.c.l.b16 %v167
    %v733 = vunpack.c.h.b16 %v167
    %v734 = vunpack.c.l.b16 %v168
    %v735 = vunpack.c.h.b16 %v168
    %v736 = vunpack.c.l.b16 %v169
    %v737 = vunpack.c.h.b16 %v169
    %v738 = vunpack.c.l.b16 %v170
    %v739 = vunpack.c.h.b16 %v170
    %v740 = vunpack.c.l.b16 %v171
    %v741 = vunpack.c.h.b16 %v171
    %v742 = vunpack.c.l.b16 %v172
    %v743 = vunpack.c.h.b16 %v172
    %v744 = vunpack.c.l.b16 %v173
    %v745 = vunpack.c.h.b16 %v173
    %v746 = vunpack.c.l.b16 %v174
    %v747 = vunpack.c.h.b16 %v174
    %v748 = vunpack.c.l.b16 %v175
    %v749 = vunpack.c.h.b16 %v175
    %v750 = vunpack.c.l.b16 %v176
    %v751 = vunpack.c.h.b16 %v176
    %v752 = vunpack.c.l.b16 %v177
    %v753 = vunpack.c.h.b16 %v177
    %v754 = vunpack.c.l.b16 %v178
    %v755 = vunpack.c.h.b16 %v178
    %v756 = vunpack.c.l.b16 %v179
    %v757 = vunpack.c.h.b16 %v179
    %v758 = vunpack.c.l.b16 %v180
    %v759 = vunpack.c.h.b16 %v180
    %v760 = vunpack.c.l.b16 %v181
    %v761 = vunpack.c.h.b16 %v181
    %v762 = vunpack.c.l.b16 %v182
    %v763 = vunpack.c.h.b16 %v182
    %v764 = vunpack.c.l.b16 %v183
    %v765 = vunpack.c.h.b16 %v183
    %v766 = vunpack.c.l.b16 %v184
    %v767 = vunpack.c.h.b16 %v184
    %v768 = vunpack.c.l.b16 %v185
    %v769 = vunpack.c.h.b16 %v185
    %v770 = vunpack.c.l.b16 %v186
    %v771 = vunpack.c.h.b16 %v186
    %v772 = vunpack.c.l.b16 %v187
    %v773 = vunpack.c.h.b16 %v187
    %v774 = vunpack.c.l.b16 %v188
    %v775 = vunpack.c.h.b16 %v188
    %v776 = vunpack.c.l.b16 %v189
    %v777 = vunpack.c.h.b16 %v189
    %v778 = vunpack.c.l.b16 %v190
    %v779 = vunpack.c.h.b16 %v190
    %v780 = vunpack.c.l.b16 %v191
    %v781 = vunpack.c.h.b16 %v191
    %v782 = vunpack.c.l.b16 %v192
    %v783 = vunpack.c.h.b16 %v192
    %v784 = vunpack.c.l.b16 %v193
    %v785 = vunpack.c.h.b16 %v193
    %v786 = vunpack.c.l.b16 %v194
    %v787 = vunpack.c.h.b16 %v194
    %v788 = vunpack.c.l.b16 %v195
    %v789 = vunpack.c.h.b16 %v195
    %v790 = vunpack.c.l.b16 %v196
    %v791 = vunpack.c.h.b16 %v196
    %v792 = vunpack.c.l.b16 %v197
    %v793 = vunpack.c.h.b16 %v197
    %v794 = vunpack.c.l.b16 %v198
    %v795 = vunpack.c.h.b16 %v198
    %v796 = vunpack.c.l.b16 %v199
    %v797 = vunpack.c.h.b16 %v199
    %v798 = vunpack.c.l.b16 %v200
    %v799 = vunpack.c.h.b16 %v200
    %v800 = vunpack.c.l.b16 %v201
    %v801 = vunpack.c.h.b16 %v201
    %v802 = vunpack.c.l.b16 %v202
    %v803 = vunpack.c.h.b16 %v202
    %v804 = vunpack.c.l.b16 %v203
    %v805 = vunpack.c.h.b16 %v203
    %v806 = vunpack.c.l.b16 %v204
    %v807 = vunpack.c.h.b16 %v204
    %v808 = vunpack.c.l.b16 %v205
    %v809 = vunpack.c.h.b16 %v205
    %v810 = vunpack.c.l.b16 %v206
    %v811 = vunpack.c.h.b16 %v206
    %v812 = vunpack.c.l.b16 %v207
    %v813 = vunpack.c.h.b16 %v207
    %v814 = vunpack.c.l.b16 %v208
    %v815 = vunpack.c.h.b16 %v208
    %v816 = vunpack.c.l.b16 %v209
    %v817 = vunpack.c.h.b16 %v209
    %v818 = vunpack.c.l.b16 %v210
    %v819 = vunpack.c.h.b16 %v210
    %v820 = vunpack.c.l.b16 %v211
    %v821 = vunpack.c.h.b16 %v211
    %v822 = vunpack.c.l.b16 %v212
    %v823 = vunpack.c.h.b16 %v212
    %v824 = vunpack.c.l.b16 %v213
    %v825 = vunpack.c.h.b16 %v213
    %v826 = vunpack.c.l.b16 %v214
    %v827 = vunpack.c.h.b16 %v214
    %v828 = vunpack.c.l.b16 %v215
    %v829 = vunpack.c.h.b16 %v215
    %v830 = vunpack.c.l.b16 %v216
    %v831 = vunpack.c.h.b16 %v216
    %v832 = vunpack.c.l.b16 %v217
    %v833 = vunpack.c.h.b16 %v217
    %v834 = vunpack.c.l.b16 %v218
    %v835 = vunpack.c.h.b16 %v218
    %v836 = vunpack.c.l.b16 %v219
    %v837 = vunpack.c.h.b16 %v219
    %v838 = vunpack.c.l.b16 %v220
    %v839 = vunpack.c.h.b16 %v220
    %v840 = vunpack.c.l.b16 %v221
    %v841 = vunpack.c.h.b16 %v221
    %v842 = vunpack.c.l.b16 %v222
    %v843 = vunpack.c.h.b16 %v222
    %v844 = vunpack.c.l.b16 %v223
    %v845 = vunpack.c.h.b16 %v223
    %v846 = vunpack.c.l.b16 %v224
    %v847 = vunpack.c.h.b16 %v224
    %v848 = vunpack.c.l.b16 %v225
    %v849 = vunpack.c.h.b16 %v225
    %v850 = vunpack.c.l.b16 %v226
    %v851 = vunpack.c.h.b16 %v226
    %v852 = vunpack.c.l.b16 %v227
    %v853 = vunpack.c.h.b16 %v227
    %v854 = vunpack.c.l.b16 %v228
    %v855 = vunpack.c.h.b16 %v228
    %v856 = vunpack.c.l.b16 %v229
    %v857 = vunpack.c.h.b16 %v229
    %v858 = vunpack.c.l.b16 %v230
    %v859 = vunpack.c.h.b16 %v230
    %v860 = vunpack.c.l.b16 %v231
    %v861 = vunpack.c.h.b16 %v231
    %v862 = vunpack.c.l.b16 %v232
    %v863 = vunpack.c.h.b16 %v232
    %v864 = vunpack.c.l.b16 %v233
    %v865 = vunpack.c.h.b16 %v233
    %v866 = vunpack.c.l.b16 %v234
    %v867 = vunpack.c.h.b16 %v234
    %v868 = vunpack.c.l.b16 %v235
    %v869 = vunpack.c.h.b16 %v235
    %v870 = vunpack.c.l.b16 %v236
    %v871 = vunpack.c.h.b16 %v236
    %v872 = vunpack.c.l.b16 %v237
    %v873 = vunpack.c.h.b16 %v237
    %v874 = vunpack.c.l.b16 %v238
    %v875 = vunpack.c.h.b16 %v238
    %v876 = vunpack.c.l.b16 %v239
    %v877 = vunpack.c.h.b16 %v239
    %v878 = vunpack.c.l.b16 %v240
    %v879 = vunpack.c.h.b16 %v240
    %v880 = vunpack.c.l.b16 %v241
    %v881 = vunpack.c.h.b16 %v241
    %v882 = vunpack.c.l.b16 %v242
    %v883 = vunpack.c.h.b16 %v242
    %v884 = vunpack.c.l.b16 %v243
    %v885 = vunpack.c.h.b16 %v243
    %v886 = vunpack.c.l.b16 %v244
    %v887 = vunpack.c.h.b16 %v244
    %v888 = vunpack.c.l.b16 %v245
    %v889 = vunpack.c.h.b16 %v245
    %v890 = vunpack.c.l.b16 %v246
    %v891 = vunpack.c.h.b16 %v246
    %v892 = vunpack.c.l.b16 %v247
    %v893 = vunpack.c.h.b16 %v247
    %v894 = vunpack.c.l.b16 %v248
    %v895 = vunpack.c.h.b16 %v248
    %v896 = vunpack.c.l.b16 %v249
    %v897 = vunpack.c.h.b16 %v249
    %v898 = vunpack.c.l.b16 %v250
    %v899 = vunpack.c.h.b16 %v250
    %v900 = vunpack.c.l.b16 %v251
    %v901 = vunpack.c.h.b16 %v251
    %v902 = vunpack.c.l.b16 %v252
    %v903 = vunpack.c.h.b16 %v252
    %v904 = vunpack.c.l.b16 %v253
    %v905 = vunpack.c.h.b16 %v253
    %v906 = vunpack.c.l.b16 %v254
    %v907 = vunpack.c.h.b16 %v254
    %v908 = vunpack.c.l.b16 %v255
    %v909 = vunpack.c.h.b16 %v255
    %v910 = vunpack.c.l.b16 %v256
    %v911 = vunpack.c.h.b16 %v256
    %v912 = vunpack.c.l.b16 %v257
    %v913 = vunpack.c.h.b16 %v257
    %v914 = vunpack.c.l.b16 %v258
    %v915 = vunpack.c.h.b16 %v258
    %v916 = vunpack.c.l.b16 %v259
    %v917 = vunpack.c.h.b16 %v259
    %v918 = vunpack.c.l.b16 %v260
    %v919 = vunpack.c.h.b16 %v260
    %v920 = vunpack.c.l.b16 %v261
    %v921 = vunpack.c.h.b16 %v261
    %v922 = vunpack.c.l.b16 %v262
    %v923 = vunpack.c.h.b16 %v262
    %v924 = vunpack.c.l.b16 %v263
    %v925 = vunpack.c.h.b16 %v263
    %v926 = vunpack.c.l.b16 %v264
    %v927 = vunpack.c.h.b16 %v264
    %v928 = vunpack.c.l.b16 %v265
    %v929 = vunpack.c.h.b16 %v265
    %v930 = vunpack.c.l.b16 %v266
    %v931 = vunpack.c.h.b16 %v266
    %v932 = vunpack.c.l.b16 %v267
    %v933 = vunpack.c.h.b16 %v267
    %v934 = vunpack.c.l.b16 %v268
    %v935 = vunpack.c.h.b16 %v268
    %v936 = vunpack.c.l.b16 %v269
    %v937 = vunpack.c.h.b16 %v269
    %v938 = vunpack.c.l.b16 %v270
    %v939 = vunpack.c.h.b16 %v270
    %v940 = vunpack.c.l.b16 %v271
    %v941 = vunpack.c.h.b16 %v271
    %v942 = vunpack.c.l.b16 %v272
    %v943 = vunpack.c.h.b16 %v272
    %v944 = vunpack.c.l.b16 %v273
    %v945 = vunpack.c.h.b16 %v273
    %v946 = vunpack.c.l.b16 %v274
    %v947 = vunpack.c.h.b16 %v274
    %v948 = vunpack.c.l.b16 %v275
    %v949 = vunpack.c.h.b16 %v275
    %v950 = vunpack.c.l.b16 %v276
    %v951 = vunpack.c.h.b16 %v276
    %v952 = vunpack.c.l.b16 %v277
    %v953 = vunpack.c.h.b16 %v277
    %v954 = vunpack.c.l.b16 %v278
    %v955 = vunpack.c.h.b16 %v278
    %v956 = vunpack.c.l.b16 %v279
    %v957 = vunpack.c.h.b16 %v279
    %v958 = vunpack.c.l.b16 %v280
    %v959 = vunpack.c.h.b16 %v280
    %v960 = vunpack.c.l.b16 %v281
    %v961 = vunpack.c.h.b16 %v281
    %v962 = vunpack.c.l.b16 %v282
    %v963 = vunpack.c.h.b16 %v282
    %v964 = vunpack.c.l.b16 %v283
    %v965 = vunpack.c.h.b16 %v283
    %v966 = vunpack.c.l.b16 %v284
    %v967 = vunpack.c.h.b16 %v284
    %v968 = vunpack.c.l.b16 %v285
    %v969 = vunpack.c.h.b16 %v285
    %v970 = vunpack.c.l.b16 %v286
    %v971 = vunpack.c.h.b16 %v286
    %v972 = vunpack.c.l.b16 %v287
    %v973 = vunpack.c.h.b16 %v287
    %v974 = vunpack.c.l.b16 %v288
    %v975 = vunpack.c.h.b16 %v288
    %v976 = vunpack.c.l.b16 %v289
    %v977 = vunpack.c.h.b16 %v289
    %v978 = vunpack.c.l.b16 %v290
    %v979 = vunpack.c.h.b16 %v290
    %v980 = vunpack.c.l.b16 %v291
    %v981 = vunpack.c.h.b16 %v291
    %v982 = vunpack.c.l.b16 %v292
    %v983 = vunpack.c.h.b16 %v292
    %v984 = vunpack.c.l.b16 %v293
    %v985 = vunpack.c.h.b16 %v293
    %v986 = vunpack.c.l.b16 %v294
    %v987 = vunpack.c.h.b16 %v294
    %v988 = vunpack.c.l.b16 %v295
    %v989 = vunpack.c.h.b16 %v295
    %v990 = vunpack.c.l.b16 %v296
    %v991 = vunpack.c.h.b16 %v296
    %v992 = vunpack.c.l.b16 %v297
    %v993 = vunpack.c.h.b16 %v297
    %v994 = vunpack.c.l.b16 %v298
    %v995 = vunpack.c.h.b16 %v298
    %v996 = vpack.c.b16 %v552, %v548
    %v997 = vpack.c.b16 %v553, %v549
    %v998 = vpack.c.b16 %v554, %v550
    %v999 = vpack.c.b16 %v555, %v551
    %v1000 = vpack.c.b16 %v560, %v556
    %v1001 = vpack.c.b16 %v561, %v557
    %v1002 = vpack.c.b16 %v562, %v558
    %v1003 = vpack.c.b16 %v563, %v559
    %v1004 = vpack.c.b16 %v568, %v564
    %v1005 = vpack.c.b16 %v569, %v565
    %v1006 = vpack.c.b16 %v570, %v566
    %v1007 = vpack.c.b16 %v571, %v567
    %v1008 = vpack.c.b16 %v576, %v572
    %v1009 = vpack.c.b16 %v577, %v573
    %v1010 = vpack.c.b16 %v578, %v574
    %v1011 = vpack.c.b16 %v579, %v575
    %v1012 = vpack.c.b16 %v584, %v580
    %v1013 = vpack.c.b16 %v585, %v581
    %v1014 = vpack.c.b16 %v586, %v582
    %v1015 = vpack.c.b16 %v587, %v583
    %v1016 = vpack.c.b16 %v592, %v588
    %v1017 = vpack.c.b16 %v593, %v589
    %v1018 = vpack.c.b16 %v594, %v590
    %v1019 = vpack.c.b16 %v595, %v591
    %v1020 = vpack.c.b16 %v600, %v596
    %v1021 = vpack.c.b16 %v601, %v597
    %v1022 = vpack.c.b16 %v602, %v598
    %v1023 = vpack.c.b16 %v603, %v599
    %v1024 = vpack.c.b16 %v608, %v604
    %v1025 = vpack.c.b16 %v609, %v605
    %v1026 = vpack.c.b16 %v610, %v606
    %v1027 = vpack.c.b16 %v611, %v607
    %v1028 = vpack.c.b16 %v616, %v612
    %v1029 = vpack.c.b16 %v617, %v613
    %v1030 = vpack.c.b16 %v618, %v614
    %v1031 = vpack.c.b16 %v619, %v615
    %v1032 = vpack.c.b16 %v624, %v620
    %v1033 = vpack.c.b16 %v625, %v621
    %v1034 = vpack.c.b16 %v626, %v622
    %v1035 = vpack.c.b16 %v627, %v623
    %v1036 = vpack.c.b16 %v632, %v628
    %v1037 = vpack.c.b16 %v633, %v629
    %v1038 = vpack.c.b16 %v634, %v630
    %v1039 = vpack.c.b16 %v635, %v631
    %v1040 = vpack.c.b16 %v640, %v636
    %v1041 = vpack.c.b16 %v641, %v637
    %v1042 = vpack.c.b16 %v642, %v638
    %v1043 = vpack.c.b16 %v643, %v639
    %v1044 = vpack.c.b16 %v648, %v644
    %v1045 = vpack.c.b16 %v649, %v645
    %v1046 = vpack.c.b16 %v650, %v646
    %v1047 = vpack.c.b16 %v651, %v647
    %v1048 = vpack.c.b16 %v656, %v652
    %v1049 = vpack.c.b16 %v657, %v653
    %v1050 = vpack.c.b16 %v658, %v654
    %v1051 = vpack.c.b16 %v659, %v655
    %v1052 = vpack.c.b16 %v664, %v660
    %v1053 = vpack.c.b16 %v665, %v661
    %v1054 = vpack.c.b16 %v666, %v662
    %v1055 = vpack.c.b16 %v667, %v663
    %v1056 = vpack.c.b16 %v672, %v668
    %v1057 = vpack.c.b16 %v673, %v669
    %v1058 = vpack.c.b16 %v674, %v670
    %v1059 = vpack.c.b16 %v675, %v671
    %v1060 = vpack.c.b16 %v680, %v676
    %v1061 = vpack.c.b16 %v681, %v677
    %v1062 = vpack.c.b16 %v682, %v678
    %v1063 = vpack.c.b16 %v683, %v679
    %v1064 = vpack.c.b16 %v688, %v684
    %v1065 = vpack.c.b16 %v689, %v685
    %v1066 = vpack.c.b16 %v690, %v686
    %v1067 = vpack.c.b16 %v691, %v687
    %v1068 = vpack.c.b16 %v696, %v692
    %v1069 = vpack.c.b16 %v697, %v693
    %v1070 = vpack.c.b16 %v698, %v694
    %v1071 = vpack.c.b16 %v699, %v695
    %v1072 = vpack.c.b16 %v704, %v700
    %v1073 = vpack.c.b16 %v705, %v701
    %v1074 = vpack.c.b16 %v706, %v702
    %v1075 = vpack.c.b16 %v707, %v703
    %v1076 = vpack.c.b16 %v712, %v708
    %v1077 = vpack.c.b16 %v713, %v709
    %v1078 = vpack.c.b16 %v714, %v710
    %v1079 = vpack.c.b16 %v715, %v711
    %v1080 = vpack.c.b16 %v720, %v716
    %v1081 = vpack.c.b16 %v721, %v717
    %v1082 = vpack.c.b16 %v722, %v718
    %v1083 = vpack.c.b16 %v723, %v719
    %v1084 = vpack.c.b16 %v728, %v724
    %v1085 = vpack.c.b16 %v729, %v725
    %v1086 = vpack.c.b16 %v730, %v726
    %v1087 = vpack.c.b16 %v731, %v727
    %v1088 = vpack.c.b16 %v736, %v732
    %v1089 = vpack.c.b16 %v737, %v733
    %v1090 = vpack.c.b16 %v738, %v734
    %v1091 = vpack.c.b16 %v739, %v735
    %v1092 = vpack.c.b16 %v744, %v740
    %v1093 = vpack.c.b16 %v745, %v741
    %v1094 = vpack.c.b16 %v746, %v742
    %v1095 = vpack.c.b16 %v747, %v743
    %v1096 = vpack.c.b16 %v752, %v748
    %v1097 = vpack.c.b16 %v753, %v749
    %v1098 = vpack.c.b16 %v754, %v750
    %v1099 = vpack.c.b16 %v755, %v751
    %v1100 = vpack.c.b16 %v760, %v756
    %v1101 = vpack.c.b16 %v761, %v757
    %v1102 = vpack.c.b16 %v762, %v758
    %v1103 = vpack.c.b16 %v763, %v759
    %v1104 = vpack.c.b16 %v768, %v764
    %v1105 = vpack.c.b16 %v769, %v765
    %v1106 = vpack.c.b16 %v770, %v766
    %v1107 = vpack.c.b16 %v771, %v767
    %v1108 = vpack.c.b16 %v776, %v772
    %v1109 = vpack.c.b16 %v777, %v773
    %v1110 = vpack.c.b16 %v778, %v774
    %v1111 = vpack.c.b16 %v779, %v775
    %v1112 = vpack.c.b16 %v784, %v780
    %v1113 = vpack.c.b16 %v785, %v781
    %v1114 = vpack.c.b16 %v786, %v782
    %v1115 = vpack.c.b16 %v787, %v783
    %v1116 = vpack.c.b16 %v792, %v788
    %v1117 = vpack.c.b16 %v793, %v789
    %v1118 = vpack.c.b16 %v794, %v790
    %v1119 = vpack.c.b16 %v795, %v791
    %v1120 = vpack.c.b16 %v800, %v796
    %v1121 = vpack.c.b16 %v801, %v797
    %v1122 = vpack.c.b16 %v802, %v798
    %v1123 = vpack.c.b16 %v803, %v799
    %v1124 = vpack.c.b16 %v808, %v804
    %v1125 = vpack.c.b16 %v809, %v805
    %v1126 = vpack.c.b16 %v810, %v806
    %v1127 = vpack.c.b16 %v811, %v807
    %v1128 = vpack.c.b16 %v816, %v812
    %v1129 = vpack.c.b16 %v817, %v813
    %v1130 = vpack.c.b16 %v818, %v814
    %v1131 = vpack.c.b16 %v819, %v815
    %v1132 = vpack.c.b16 %v824, %v820
    %v1133 = vpack.c.b16 %v825, %v821
    %v1134 = vpack.c.b16 %v826, %v822
    %v1135 = vpack.c.b16 %v827, %v823
    %v1136 = vpack.c.b16 %v832, %v828
    %v1137 = vpack.c.b16 %v833, %v829
    %v1138 = vpack.c.b16 %v834, %v830
    %v1139 = vpack.c.b16 %v835, %v831
    %v1140 = vpack.c.b16 %v840, %v836
    %v1141 = vpack.c.b16 %v841, %v837
    %v1142 = vpack.c.b16 %v842, %v838
    %v1143 = vpack.c.b16 %v843, %v839
    %v1144 = vpack.c.b16 %v848, %v844
    %v1145 = vpack.c.b16 %v849, %v845
    %v1146 = vpack.c.b16 %v850, %v846
    %v1147 = vpack.c.b16 %v851, %v847
    %v1148 = vpack.c.b16 %v856, %v852
    %v1149 = vpack.c.b16 %v857, %v853
    %v1150 = vpack.c.b16 %v858, %v854
    %v1151 = vpack.c.b16 %v859, %v855
    %v1152 = vpack.c.b16 %v864, %v860
    %v1153 = vpack.c.b16 %v865, %v861
    %v1154 = vpack.c.b16 %v866, %v862
    %v1155 = vpack.c.b16 %v867, %v863
    %v1156 = vpack.c.b16 %v872, %v868
    %v1157 = vpack.c.b16 %v873, %v869
    %v1158 = vpack.c.b16 %v874, %v870
    %v1159 = vpack.c.b16 %v875, %v871
    %v1160 = vpack.c.b16 %v880, %v876
    %v1161 = vpack.c.b16 %v881, %v877
    %v1162 = vpack.c.b16 %v882, %v878
    %v1163 = vpack.c.b16 %v883, %v879
    %v1164 = vpack.c.b16 %v888, %v884
    %v1165 = vpack.c.b16 %v889, %v885
    %v1166 = vpack.c.b16 %v890, %v886
    %v1167 = vpack.c.b16 %v891, %v887
    %v1168 = vpack.c.b16 %v896, %v892
    %v1169 = vpack.c.b16 %v897, %v893
    %v1170 = vpack.c.b16 %v898, %v894
    %v1171 = vpack.c.b16 %v899, %v895
    %v1172 = vpack.c.b16 %v904, %v900
    %v1173 = vpack.c.b16 %v905, %v901
    %v1174 = vpack.c.b16 %v906, %v902
    %v1175 = vpack.c.b16 %v907, %v903
    %v1176 = vpack.c.b16 %v912, %v908
    %v1177 = vpack.c.b16 %v913, %v909
    %v1178 = vpack.c.b16 %v914, %v910
    %v1179 = vpack.c.b16 %v915, %v911
    %v1180 = vpack.c.b16 %v920, %v916
    %v1181 = vpack.c.b16 %v921, %v917
    %v1182 = vpack.c.b16 %v922, %v918
    %v1183 = vpack.c.b16 %v923, %v919
    %v1184 = vpack.c.b16 %v928, %v924
    %v1185 = vpack.c.b16 %v929, %v925
    %v1186 = vpack.c.b16 %v930, %v926
    %v1187 = vpack.c.b16 %v931, %v927
    %v1188 = vpack.c.b16 %v936, %v932
    %v1189 = vpack.c.b16 %v937, %v933
    %v1190 = vpack.c.b16 %v938, %v934
    %v1191 = vpack.c.b16 %v939, %v935
    %v1192 = vpack.c.b16 %v944, %v940
    %v1193 = vpack.c.b16 %v945, %v941
    %v1194 = vpack.c.b16 %v946, %v942
    %v1195 = vpack.c.b16 %v947, %v943
    %v1196 = vpack.c.b16 %v952, %v948
    %v1197 = vpack.c.b16 %v953, %v949
    %v1198 = vpack.c.b16 %v954, %v950
    %v1199 = vpack.c.b16 %v955, %v951
    %v1200 = vpack.c.b16 %v960, %v956
    %v1201 = vpack.c.b16 %v961, %v957
    %v1202 = vpack.c.b16 %v962, %v958
    %v1203 = vpack.c.b16 %v963, %v959
    %v1204 = vpack.c.b16 %v968, %v964
    %v1205 = vpack.c.b16 %v969, %v965
    %v1206 = vpack.c.b16 %v970, %v966
    %v1207 = vpack.c.b16 %v971, %v967
    %v1208 = vpack.c.b16 %v976, %v972
    %v1209 = vpack.c.b16 %v977, %v973
    %v1210 = vpack.c.b16 %v978, %v974
    %v1211 = vpack.c.b16 %v979, %v975
    %v1212 = vpack.c.b16 %v984, %v980
    %v1213 = vpack.c.b16 %v985, %v981
    %v1214 = vpack.c.b16 %v986, %v982
    %v1215 = vpack.c.b16 %v987, %v983
    %v1216 = vpack.c.b16 %v992, %v988
    %v1217 = vpack.c.b16 %v993, %v989
    %v1218 = vpack.c.b16 %v994, %v990
    %v1219 = vpack.c.b16 %v995, %v991
    %1444 = vmatprep.subr.bf16.mxu0 %v997
    %1445 = vmatpush1.bf16.msra.mxu0 %v996
    %1446 = vmatprep.subr.bf16.mxu0 %v1001
    %1447 = vmatpush1.bf16.msra.mxu0 %v1000
    %1448 = vmatprep.subr.bf16.mxu0 %v1005
    %1449 = vmatpush1.bf16.msra.mxu0 %v1004
    %1450 = vmatprep.subr.bf16.mxu0 %v1009
    %1451 = vmatpush1.bf16.msra.mxu0 %v1008
    %1452 = vmatprep.subr.bf16.mxu0 %v1013
    %1453 = vmatpush1.bf16.msra.mxu0 %v1012
    %1454 = vmatprep.subr.bf16.mxu0 %v1017
    %1455 = vmatpush1.bf16.msra.mxu0 %v1016
    %1456 = vmatprep.subr.bf16.mxu0 %v1021
    %1457 = vmatpush1.bf16.msra.mxu0 %v1020
    %1458 = vmatprep.subr.bf16.mxu0 %v1025
    %1459 = vmatpush1.bf16.msra.mxu0 %v1024
    %1460 = vmatprep.subr.bf16.mxu0 %v1029
    %1461 = vmatpush1.bf16.msra.mxu0 %v1028
    %1462 = vmatprep.subr.bf16.mxu0 %v1033
    %1463 = vmatpush1.bf16.msra.mxu0 %v1032
    %1464 = vmatprep.subr.bf16.mxu0 %v1037
    %1465 = vmatpush1.bf16.msra.mxu0 %v1036
    %1466 = vmatprep.subr.bf16.mxu0 %v1041
    %1467 = vmatpush1.bf16.msra.mxu0 %v1040
    %1468 = vmatprep.subr.bf16.mxu0 %v1045
    %1469 = vmatpush1.bf16.msra.mxu0 %v1044
    %1470 = vmatprep.subr.bf16.mxu0 %v1049
    %1471 = vmatpush1.bf16.msra.mxu0 %v1048
    %1472 = vmatprep.subr.bf16.mxu0 %v1053
    %1473 = vmatpush1.bf16.msra.mxu0 %v1052
    %1474 = vmatprep.subr.bf16.mxu0 %v1057
    %1475 = vmatpush1.bf16.msra.mxu0 %v1056
    %1476 = vmatprep.mubr.bf16.mxu0 %v311
    %1477 = vmatmul.mubr.bf16.gmra.mrb[0].mxu0 %v310
    %v1478 = vpop.f32.mrb[0].mxu0
    %v1479 = vadd.f32 0.0, %v1478
    %v1480 = vpop.f32.mrb[0].mxu0
    %v1481 = vadd.f32 0.0, %v1480
    %v1482 = vpop.f32.mrb[0].mxu0
    %v1483 = vpop.f32.mrb[0].mxu0
    %1484 = vdwg.mxu0
    %1485 = vmatprep.subr.bf16.mxu0 %v1061
    %1486 = vmatpush1.bf16.msra.mxu0 %v1060
    %1487 = vmatprep.subr.bf16.mxu0 %v1065
    %1488 = vmatpush1.bf16.msra.mxu0 %v1064
    %1489 = vmatprep.subr.bf16.mxu0 %v1069
    %1490 = vmatpush1.bf16.msra.mxu0 %v1068
    %1491 = vmatprep.subr.bf16.mxu0 %v1073
    %1492 = vmatpush1.bf16.msra.mxu0 %v1072
    %1493 = vmatprep.subr.bf16.mxu0 %v1077
    %1494 = vmatpush1.bf16.msra.mxu0 %v1076
    %1495 = vmatprep.subr.bf16.mxu0 %v1081
    %1496 = vmatpush1.bf16.msra.mxu0 %v1080
    %1497 = vmatprep.subr.bf16.mxu0 %v1085
    %1498 = vmatpush1.bf16.msra.mxu0 %v1084
    %1499 = vmatprep.subr.bf16.mxu0 %v1089
    %1500 = vmatpush1.bf16.msra.mxu0 %v1088
    %1501 = vmatprep.subr.bf16.mxu0 %v1093
    %1502 = vmatpush1.bf16.msra.mxu0 %v1092
    %1503 = vmatprep.subr.bf16.mxu0 %v1097
    %1504 = vmatpush1.bf16.msra.mxu0 %v1096
    %1505 = vmatprep.subr.bf16.mxu0 %v1101
    %1506 = vmatpush1.bf16.msra.mxu0 %v1100
    %1507 = vmatprep.subr.bf16.mxu0 %v1105
    %1508 = vmatpush1.bf16.msra.mxu0 %v1104
    %1509 = vmatprep.subr.bf16.mxu0 %v1109
    %1510 = vmatpush1.bf16.msra.mxu0 %v1108
    %1511 = vmatprep.subr.bf16.mxu0 %v1113
    %1512 = vmatpush1.bf16.msra.mxu0 %v1112
    %1513 = vmatprep.subr.bf16.mxu0 %v1117
    %1514 = vmatpush1.bf16.msra.mxu0 %v1116
    %1515 = vmatprep.subr.bf16.mxu0 %v1121
    %1516 = vmatpush1.bf16.msra.mxu0 %v1120
    %1517 = vmatprep.mubr.bf16.mxu0 %v313
    %1518 = vmatmul.mubr.bf16.gmra.mrb[0].mxu0 %v312
    %v1519 = vpop.f32.mrb[0].mxu0
    %v1520 = vadd.f32 %v1479, %v1519
    %v1521 = vpop.f32.mrb[0].mxu0
    %v1522 = vadd.f32 %v1481, %v1521
    %v1523 = vpop.f32.mrb[0].mxu0
    %v1524 = vpop.f32.mrb[0].mxu0
    %1525 = vdwg.mxu0
    %1526 = vmatprep.subr.bf16.mxu0 %v1125
    %1527 = vmatpush1.bf16.msra.mxu0 %v1124
    %1528 = vmatprep.subr.bf16.mxu0 %v1129
    %1529 = vmatpush1.bf16.msra.mxu0 %v1128
    %1530 = vmatprep.subr.bf16.mxu0 %v1133
    %1531 = vmatpush1.bf16.msra.mxu0 %v1132
    %1532 = vmatprep.subr.bf16.mxu0 %v1137
    %1533 = vmatpush1.bf16.msra.mxu0 %v1136
    %1534 = vmatprep.subr.bf16.mxu0 %v1141
    %1535 = vmatpush1.bf16.msra.mxu0 %v1140
    %1536 = vmatprep.subr.bf16.mxu0 %v1145
    %1537 = vmatpush1.bf16.msra.mxu0 %v1144
    %1538 = vmatprep.subr.bf16.mxu0 %v1149
    %1539 = vmatpush1.bf16.msra.mxu0 %v1148
    %1540 = vmatprep.subr.bf16.mxu0 %v1153
    %1541 = vmatpush1.bf16.msra.mxu0 %v1152
    %1542 = vmatprep.subr.bf16.mxu0 %v1157
    %1543 = vmatpush1.bf16.msra.mxu0 %v1156
    %1544 = vmatprep.subr.bf16.mxu0 %v1161
    %1545 = vmatpush1.bf16.msra.mxu0 %v1160
    %1546 = vmatprep.subr.bf16.mxu0 %v1165
    %1547 = vmatpush1.bf16.msra.mxu0 %v1164
    %1548 = vmatprep.subr.bf16.mxu0 %v1169
    %1549 = vmatpush1.bf16.msra.mxu0 %v1168
    %1550 = vmatprep.subr.bf16.mxu0 %v1173
    %1551 = vmatpush1.bf16.msra.mxu0 %v1172
    %1552 = vmatprep.subr.bf16.mxu0 %v1177
    %1553 = vmatpush1.bf16.msra.mxu0 %v1176
    %1554 = vmatprep.subr.bf16.mxu0 %v1181
    %1555 = vmatpush1.bf16.msra.mxu0 %v1180
    %1556 = vmatprep.subr.bf16.mxu0 %v1185
    %1557 = vmatpush1.bf16.msra.mxu0 %v1184
    %1558 = vmatprep.mubr.bf16.mxu0 %v315
    %1559 = vmatmul.mubr.bf16.gmra.mrb[0].mxu0 %v314
    %v1560 = vpop.f32.mrb[0].mxu0
    %v1561 = vadd.f32 %v1520, %v1560
    %v1562 = vpop.f32.mrb[0].mxu0
    %v1563 = vadd.f32 %v1522, %v1562
    %v1564 = vpop.f32.mrb[0].mxu0
    %v1565 = vpop.f32.mrb[0].mxu0
    %1566 = vdwg.mxu0
    %1567 = vmatprep.subr.bf16.mxu0 %v1189
    %1568 = vmatpush1.bf16.msra.mxu0 %v1188
    %1569 = vmatprep.subr.bf16.mxu0 %v1193
    %1570 = vmatpush1.bf16.msra.mxu0 %v1192
    %1571 = vmatprep.subr.bf16.mxu0 %v1197
    %1572 = vmatpush1.bf16.msra.mxu0 %v1196
    %1573 = vmatprep.subr.bf16.mxu0 %v1201
    %1574 = vmatpush1.bf16.msra.mxu0 %v1200
    %1575 = vmatprep.subr.bf16.mxu0 %v1205
    %1576 = vmatpush1.bf16.msra.mxu0 %v1204
    %1577 = vmatprep.subr.bf16.mxu0 %v1209
    %1578 = vmatpush1.bf16.msra.mxu0 %v1208
    %1579 = vmatprep.subr.bf16.mxu0 %v1213
    %1580 = vmatpush1.bf16.msra.mxu0 %v1212
    %1581 = vmatprep.subr.bf16.mxu0 %v1217
    %1582 = vmatpush1.bf16.msra.mxu0 %v1216
    %1583 = vmatprep.subr.bf16.mxu0 0
    %1584 = vmatpush1.bf16.msra.mxu0 0
    %1585 = vmatprep.subr.bf16.mxu0 0
    %1586 = vmatpush1.bf16.msra.mxu0 0
    %1587 = vmatprep.subr.bf16.mxu0 0
    %1588 = vmatpush1.bf16.msra.mxu0 0
    %1589 = vmatprep.subr.bf16.mxu0 0
    %1590 = vmatpush1.bf16.msra.mxu0 0
    %1591 = vmatprep.subr.bf16.mxu0 0
    %1592 = vmatpush1.bf16.msra.mxu0 0
    %1593 = vmatprep.subr.bf16.mxu0 0
    %1594 = vmatpush1.bf16.msra.mxu0 0
    %1595 = vmatprep.subr.bf16.mxu0 0
    %1596 = vmatpush1.bf16.msra.mxu0 0
    %1597 = vmatprep.subr.bf16.mxu0 0
    %1598 = vmatpush1.bf16.msra.mxu0 0
    %1599 = vmatprep.mubr.bf16.mxu0 0
    %1600 = vmatmul.mubr.bf16.gmra.mrb[0].mxu0 %v316
    %v1601 = vpop.f32.mrb[0].mxu0
    %v1602 = vadd.f32 %v1561, %v1601
    %v1603 = vpop.f32.mrb[0].mxu0
    %v1604 = vadd.f32 %v1563, %v1603
    %v1605 = vpop.f32.mrb[0].mxu0
    %v1606 = vpop.f32.mrb[0].mxu0
    %1607 = vdwg.mxu0
    %1608 = vmatprep.subr.bf16.mxu0 %v999
    %1609 = vmatpush1.bf16.msra.mxu0 %v998
    %1610 = vmatprep.subr.bf16.mxu0 %v1003
    %1611 = vmatpush1.bf16.msra.mxu0 %v1002
    %1612 = vmatprep.subr.bf16.mxu0 %v1007
    %1613 = vmatpush1.bf16.msra.mxu0 %v1006
    %1614 = vmatprep.subr.bf16.mxu0 %v1011
    %1615 = vmatpush1.bf16.msra.mxu0 %v1010
    %1616 = vmatprep.subr.bf16.mxu0 %v1015
    %1617 = vmatpush1.bf16.msra.mxu0 %v1014
    %1618 = vmatprep.subr.bf16.mxu0 %v1019
    %1619 = vmatpush1.bf16.msra.mxu0 %v1018
    %1620 = vmatprep.subr.bf16.mxu0 %v1023
    %1621 = vmatpush1.bf16.msra.mxu0 %v1022
    %1622 = vmatprep.subr.bf16.mxu0 %v1027
    %1623 = vmatpush1.bf16.msra.mxu0 %v1026
    %1624 = vmatprep.subr.bf16.mxu0 %v1031
    %1625 = vmatpush1.bf16.msra.mxu0 %v1030
    %1626 = vmatprep.subr.bf16.mxu0 %v1035
    %1627 = vmatpush1.bf16.msra.mxu0 %v1034
    %1628 = vmatprep.subr.bf16.mxu0 %v1039
    %1629 = vmatpush1.bf16.msra.mxu0 %v1038
    %1630 = vmatprep.subr.bf16.mxu0 %v1043
    %1631 = vmatpush1.bf16.msra.mxu0 %v1042
    %1632 = vmatprep.subr.bf16.mxu0 %v1047
    %1633 = vmatpush1.bf16.msra.mxu0 %v1046
    %1634 = vmatprep.subr.bf16.mxu0 %v1051
    %1635 = vmatpush1.bf16.msra.mxu0 %v1050
    %1636 = vmatprep.subr.bf16.mxu0 %v1055
    %1637 = vmatpush1.bf16.msra.mxu0 %v1054
    %1638 = vmatprep.subr.bf16.mxu0 %v1059
    %1639 = vmatpush1.bf16.msra.mxu0 %v1058
    %1640 = vmatprep.mubr.bf16.mxu0 %v311
    %1641 = vmatmul.mubr.bf16.gmra.mrb[0].mxu0 %v310
    %v1642 = vpop.f32.mrb[0].mxu0
    %v1643 = vadd.f32 0.0, %v1642
    %v1644 = vpop.f32.mrb[0].mxu0
    %v1645 = vadd.f32 0.0, %v1644
    %v1646 = vpop.f32.mrb[0].mxu0
    %v1647 = vpop.f32.mrb[0].mxu0
    %1648 = vdwg.mxu0
    %1649 = vmatprep.subr.bf16.mxu0 %v1063
    %1650 = vmatpush1.bf16.msra.mxu0 %v1062
    %1651 = vmatprep.subr.bf16.mxu0 %v1067
    %1652 = vmatpush1.bf16.msra.mxu0 %v1066
    %1653 = vmatprep.subr.bf16.mxu0 %v1071
    %1654 = vmatpush1.bf16.msra.mxu0 %v1070
    %1655 = vmatprep.subr.bf16.mxu0 %v1075
    %1656 = vmatpush1.bf16.msra.mxu0 %v1074
    %1657 = vmatprep.subr.bf16.mxu0 %v1079
    %1658 = vmatpush1.bf16.msra.mxu0 %v1078
    %1659 = vmatprep.subr.bf16.mxu0 %v1083
    %1660 = vmatpush1.bf16.msra.mxu0 %v1082
    %1661 = vmatprep.subr.bf16.mxu0 %v1087
    %1662 = vmatpush1.bf16.msra.mxu0 %v1086
    %1663 = vmatprep.subr.bf16.mxu0 %v1091
    %1664 = vmatpush1.bf16.msra.mxu0 %v1090
    %1665 = vmatprep.subr.bf16.mxu0 %v1095
    %1666 = vmatpush1.bf16.msra.mxu0 %v1094
    %1667 = vmatprep.subr.bf16.mxu0 %v1099
    %1668 = vmatpush1.bf16.msra.mxu0 %v1098
    %1669 = vmatprep.subr.bf16.mxu0 %v1103
    %1670 = vmatpush1.bf16.msra.mxu0 %v1102
    %1671 = vmatprep.subr.bf16.mxu0 %v1107
    %1672 = vmatpush1.bf16.msra.mxu0 %v1106
    %1673 = vmatprep.subr.bf16.mxu0 %v1111
    %1674 = vmatpush1.bf16.msra.mxu0 %v1110
    %1675 = vmatprep.subr.bf16.mxu0 %v1115
    %1676 = vmatpush1.bf16.msra.mxu0 %v1114
    %1677 = vmatprep.subr.bf16.mxu0 %v1119
    %1678 = vmatpush1.bf16.msra.mxu0 %v1118
    %1679 = vmatprep.subr.bf16.mxu0 %v1123
    %1680 = vmatpush1.bf16.msra.mxu0 %v1122
    %1681 = vmatprep.mubr.bf16.mxu0 %v313
    %1682 = vmatmul.mubr.bf16.gmra.mrb[0].mxu0 %v312
    %v1683 = vpop.f32.mrb[0].mxu0
    %v1684 = vadd.f32 %v1643, %v1683
    %v1685 = vpop.f32.mrb[0].mxu0
    %v1686 = vadd.f32 %v1645, %v1685
    %v1687 = vpop.f32.mrb[0].mxu0
    %v1688 = vpop.f32.mrb[0].mxu0
    %1689 = vdwg.mxu0
    %1690 = vmatprep.subr.bf16.mxu0 %v1127
    %1691 = vmatpush1.bf16.msra.mxu0 %v1126
    %1692 = vmatprep.subr.bf16.mxu0 %v1131
    %1693 = vmatpush1.bf16.msra.mxu0 %v1130
    %1694 = vmatprep.subr.bf16.mxu0 %v1135
    %1695 = vmatpush1.bf16.msra.mxu0 %v1134
    %1696 = vmatprep.subr.bf16.mxu0 %v1139
    %1697 = vmatpush1.bf16.msra.mxu0 %v1138
    %1698 = vmatprep.subr.bf16.mxu0 %v1143
    %1699 = vmatpush1.bf16.msra.mxu0 %v1142
    %1700 = vmatprep.subr.bf16.mxu0 %v1147
    %1701 = vmatpush1.bf16.msra.mxu0 %v1146
    %1702 = vmatprep.subr.bf16.mxu0 %v1151
    %1703 = vmatpush1.bf16.msra.mxu0 %v1150
    %1704 = vmatprep.subr.bf16.mxu0 %v1155
    %1705 = vmatpush1.bf16.msra.mxu0 %v1154
    %1706 = vmatprep.subr.bf16.mxu0 %v1159
    %1707 = vmatpush1.bf16.msra.mxu0 %v1158
    %1708 = vmatprep.subr.bf16.mxu0 %v1163
    %1709 = vmatpush1.bf16.msra.mxu0 %v1162
    %1710 = vmatprep.subr.bf16.mxu0 %v1167
    %1711 = vmatpush1.bf16.msra.mxu0 %v1166
    %1712 = vmatprep.subr.bf16.mxu0 %v1171
    %1713 = vmatpush1.bf16.msra.mxu0 %v1170
    %1714 = vmatprep.subr.bf16.mxu0 %v1175
    %1715 = vmatpush1.bf16.msra.mxu0 %v1174
    %1716 = vmatprep.subr.bf16.mxu0 %v1179
    %1717 = vmatpush1.bf16.msra.mxu0 %v1178
    %1718 = vmatprep.subr.bf16.mxu0 %v1183
    %1719 = vmatpush1.bf16.msra.mxu0 %v1182
    %1720 = vmatprep.subr.bf16.mxu0 %v1187
    %1721 = vmatpush1.bf16.msra.mxu0 %v1186
    %1722 = vmatprep.mubr.bf16.mxu0 %v315
    %1723 = vmatmul.mubr.bf16.gmra.mrb[0].mxu0 %v314
    %v1724 = vpop.f32.mrb[0].mxu0
    %v1725 = vadd.f32 %v1684, %v1724
    %v1726 = vpop.f32.mrb[0].mxu0
    %v1727 = vadd.f32 %v1686, %v1726
    %v1728 = vpop.f32.mrb[0].mxu0
    %v1729 = vpop.f32.mrb[0].mxu0
    %1730 = vdwg.mxu0
    %1731 = vmatprep.subr.bf16.mxu0 %v1191
    %1732 = vmatpush1.bf16.msra.mxu0 %v1190
    %1733 = vmatprep.subr.bf16.mxu0 %v1195
    %1734 = vmatpush1.bf16.msra.mxu0 %v1194
    %1735 = vmatprep.subr.bf16.mxu0 %v1199
    %1736 = vmatpush1.bf16.msra.mxu0 %v1198
    %1737 = vmatprep.subr.bf16.mxu0 %v1203
    %1738 = vmatpush1.bf16.msra.mxu0 %v1202
    %1739 = vmatprep.subr.bf16.mxu0 %v1207
    %1740 = vmatpush1.bf16.msra.mxu0 %v1206
    %1741 = vmatprep.subr.bf16.mxu0 %v1211
    %1742 = vmatpush1.bf16.msra.mxu0 %v1210
    %1743 = vmatprep.subr.bf16.mxu0 %v1215
    %1744 = vmatpush1.bf16.msra.mxu0 %v1214
    %1745 = vmatprep.subr.bf16.mxu0 %v1219
    %1746 = vmatpush1.bf16.msra.mxu0 %v1218
    %1747 = vmatprep.subr.bf16.mxu0 0
    %1748 = vmatpush1.bf16.msra.mxu0 0
    %1749 = vmatprep.subr.bf16.mxu0 0
    %1750 = vmatpush1.bf16.msra.mxu0 0
    %1751 = vmatprep.subr.bf16.mxu0 0
    %1752 = vmatpush1.bf16.msra.mxu0 0
    %1753 = vmatprep.subr.bf16.mxu0 0
    %1754 = vmatpush1.bf16.msra.mxu0 0
    %1755 = vmatprep.subr.bf16.mxu0 0
    %1756 = vmatpush1.bf16.msra.mxu0 0
    %1757 = vmatprep.subr.bf16.mxu0 0
    %1758 = vmatpush1.bf16.msra.mxu0 0
    %1759 = vmatprep.subr.bf16.mxu0 0
    %1760 = vmatpush1.bf16.msra.mxu0 0
    %1761 = vmatprep.subr.bf16.mxu0 0
    %1762 = vmatpush1.bf16.msra.mxu0 0
    %1763 = vmatprep.mubr.bf16.mxu0 0
    %1764 = vmatmul.mubr.bf16.gmra.mrb[0].mxu0 %v316
    %v1765 = vpop.f32.mrb[0].mxu0
    %v1766 = vadd.f32 %v1725, %v1765
    %v1767 = vpop.f32.mrb[0].mxu0
    %v1768 = vadd.f32 %v1727, %v1767
    %v1769 = vpop.f32.mrb[0].mxu0
    %v1770 = vpop.f32.mrb[0].mxu0
    %1771 = vdwg.mxu0
    %v1772 = vld [vmem:[%s2] sm:$0xf]
    %v1773 = vld [vmem:[%s3] sm:$0xf]
    %v1774 = vrot.slane %v1602, 4
    %v1775 = vadd.f32 %v1602, %v1774
    %v1776 = vrot.slane %v1775, 2
    %v1777 = vadd.f32 %v1775, %v1776
    %v1778 = vrot.slane %v1777, 1
    %v1779 = vadd.f32 %v1777, %v1778
    %v1780 = vrot.slane %v1604, 4
    %v1781 = vadd.f32 %v1604, %v1780
    %v1782 = vrot.slane %v1781, 2
    %v1783 = vadd.f32 %v1781, %v1782
    %v1784 = vrot.slane %v1783, 1
    %v1785 = vadd.f32 %v1783, %v1784
    %v1786 = vrot.slane %v1766, 4
    %v1787 = vadd.f32 %v1766, %v1786
    %v1788 = vrot.slane %v1787, 2
    %v1789 = vadd.f32 %v1787, %v1788
    %v1790 = vrot.slane %v1789, 1
    %v1791 = vadd.f32 %v1789, %v1790
    %v1792 = vrot.slane %v1768, 4
    %v1793 = vadd.f32 %v1768, %v1792
    %v1794 = vrot.slane %v1793, 2
    %v1795 = vadd.f32 %v1793, %v1794
    %v1796 = vrot.slane %v1795, 1
    %v1797 = vadd.f32 %v1795, %v1796
    %v1798 = vmul.f32 %v1779, 0.125
    %v1799 = vmul.f32 %v1785, 0.125
    %v1800 = vmul.f32 %v1791, 0.125
    %v1801 = vmul.f32 %v1797, 0.125
    %v1802 = vmul.f32 %v1602, %v1602
    %v1803 = vmul.f32 %v1604, %v1604
    %v1804 = vmul.f32 %v1766, %v1766
    %v1805 = vmul.f32 %v1768, %v1768
    %v1806 = vrot.slane %v1802, 4
    %v1807 = vadd.f32 %v1802, %v1806
    %v1808 = vrot.slane %v1807, 2
    %v1809 = vadd.f32 %v1807, %v1808
    %v1810 = vrot.slane %v1809, 1
    %v1811 = vadd.f32 %v1809, %v1810
    %v1812 = vrot.slane %v1803, 4
    %v1813 = vadd.f32 %v1803, %v1812
    %v1814 = vrot.slane %v1813, 2
    %v1815 = vadd.f32 %v1813, %v1814
    %v1816 = vrot.slane %v1815, 1
    %v1817 = vadd.f32 %v1815, %v1816
    %v1818 = vrot.slane %v1804, 4
    %v1819 = vadd.f32 %v1804, %v1818
    %v1820 = vrot.slane %v1819, 2
    %v1821 = vadd.f32 %v1819, %v1820
    %v1822 = vrot.slane %v1821, 1
    %v1823 = vadd.f32 %v1821, %v1822
    %v1824 = vrot.slane %v1805, 4
    %v1825 = vadd.f32 %v1805, %v1824
    %v1826 = vrot.slane %v1825, 2
    %v1827 = vadd.f32 %v1825, %v1826
    %v1828 = vrot.slane %v1827, 1
    %v1829 = vadd.f32 %v1827, %v1828
    %v1830 = vmul.f32 %v1811, 0.125
    %v1831 = vmul.f32 %v1817, 0.125
    %v1832 = vmul.f32 %v1823, 0.125
    %v1833 = vmul.f32 %v1829, 0.125
    %v1834 = vmul.f32 %v1798, %v1798
    %v1835 = vmul.f32 %v1799, %v1799
    %v1836 = vmul.f32 %v1800, %v1800
    %v1837 = vmul.f32 %v1801, %v1801
    %v1838 = vsub.f32 %v1830, %v1834
    %v1839 = vsub.f32 %v1831, %v1835
    %v1840 = vsub.f32 %v1832, %v1836
    %v1841 = vsub.f32 %v1833, %v1837
    %v1842 = vmax.f32 %v1838, 0.0
    %v1843 = vmax.f32 %v1839, 0.0
    %v1844 = vmax.f32 %v1840, 0.0
    %v1845 = vmax.f32 %v1841, 0.0
    %v1846 = vadd.f32 %v1842, 1e-05
    %v1847 = vadd.f32 %v1843, 1e-05
    %v1848 = vadd.f32 %v1844, 1e-05
    %v1849 = vadd.f32 %v1845, 1e-05
    %v1850 = vrsqrt.pop %v1846
    %v1851 = vrsqrt.pop %v1847
    %v1852 = vrsqrt.pop %v1848
    %v1853 = vrsqrt.pop %v1849
    %v1858 = vcombine.low %v1850, %v1851
    %v1859 = vcombine.low %v1852, %v1853
    %v1861 = vunpack.c.l.s4 1966171168
    %v1862 = vunpack.c.0.s8 %v1861
    %v1863 = vlaneseq
    %v1864 = vshrl.u32 %v1863, 7
    %v1865 = vsub.s32 %v1862, %v1864
    %v1866 = vrot.slane %v1858, %v1865
    %v1868 = vunpack.c.l.s4 1966171168
    %v1869 = vunpack.c.0.s8 %v1868
    %v1870 = vlaneseq
    %v1871 = vshrl.u32 %v1870, 7
    %v1872 = vsub.s32 %v1869, %v1871
    %v1873 = vrot.slane %v1859, %v1872
    %v1874 = vcombine.low %v1866, %v1873
    %v1876 = vunpack.c.l.s4 1966171168
    %v1877 = vunpack.c.0.s8 %v1876
    %v1878 = vlaneseq
    %v1879 = vshrl.u32 %v1878, 7
    %v1880 = vsub.s32 %v1877, %v1879
    %v1881 = vrot.slane %v1874, %v1880
    %v1883 = vmul.f32 %v1772, %v1881
    %v1885 = vlaneseq
    %v1886 = vshrl.u32 %v1885, 7
    %v1887 = vsub.s32 0, %v1886
    %v1888 = vrot.slane %v1883, %v1887
    %v1889 = vlaneseq
    %v1890 = vshrl.u32 %v1889, 7
    %v1891 = vsub.s32 1, %v1890
    %v1892 = vrot.slane %v1883, %v1891
    %v1893 = vlaneseq
    %v1894 = vshrl.u32 %v1893, 7
    %v1895 = vsub.s32 2, %v1894
    %v1896 = vrot.slane %v1883, %v1895
    %v1897 = vlaneseq
    %v1898 = vshrl.u32 %v1897, 7
    %v1899 = vsub.s32 3, %v1898
    %v1900 = vrot.slane %v1883, %v1899
    %v1905 = vmul.f32 %v1798, %v1888
    %v1906 = vmul.f32 %v1799, %v1892
    %v1907 = vmul.f32 %v1800, %v1896
    %v1908 = vmul.f32 %v1801, %v1900
    %v1913 = vcombine.low %v1905, %v1906
    %v1914 = vcombine.low %v1907, %v1908
    %v1916 = vunpack.c.l.s4 1966171168
    %v1917 = vunpack.c.0.s8 %v1916
    %v1918 = vlaneseq
    %v1919 = vshrl.u32 %v1918, 7
    %v1920 = vsub.s32 %v1917, %v1919
    %v1921 = vrot.slane %v1913, %v1920
    %v1923 = vunpack.c.l.s4 1966171168
    %v1924 = vunpack.c.0.s8 %v1923
    %v1925 = vlaneseq
    %v1926 = vshrl.u32 %v1925, 7
    %v1927 = vsub.s32 %v1924, %v1926
    %v1928 = vrot.slane %v1914, %v1927
    %v1929 = vcombine.low %v1921, %v1928
    %v1931 = vunpack.c.l.s4 1966171168
    %v1932 = vunpack.c.0.s8 %v1931
    %v1933 = vlaneseq
    %v1934 = vshrl.u32 %v1933, 7
    %v1935 = vsub.s32 %v1932, %v1934
    %v1936 = vrot.slane %v1929, %v1935
    %v1938 = vsub.f32 %v1773, %v1936
    %v1939 = vmul.f32 %v1602, %v1888
    %v1940 = vmul.f32 %v1604, %v1892
    %v1941 = vmul.f32 %v1766, %v1896
    %v1942 = vmul.f32 %v1768, %v1900
    %v1944 = vlaneseq
    %v1945 = vshrl.u32 %v1944, 7
    %v1946 = vsub.s32 0, %v1945
    %v1947 = vrot.slane %v1938, %v1946
    %v1948 = vlaneseq
    %v1949 = vshrl.u32 %v1948, 7
    %v1950 = vsub.s32 1, %v1949
    %v1951 = vrot.slane %v1938, %v1950
    %v1952 = vlaneseq
    %v1953 = vshrl.u32 %v1952, 7
    %v1954 = vsub.s32 2, %v1953
    %v1955 = vrot.slane %v1938, %v1954
    %v1956 = vlaneseq
    %v1957 = vshrl.u32 %v1956, 7
    %v1958 = vsub.s32 3, %v1957
    %v1959 = vrot.slane %v1938, %v1958
    %v1964 = vadd.f32 %v1939, %v1947
    %v1965 = vadd.f32 %v1940, %v1951
    %v1966 = vadd.f32 %v1941, %v1955
    %v1967 = vadd.f32 %v1942, %v1959
    %v1968 = vmax.f32 %v1964, 0.0
    %v1969 = vmax.f32 %v1965, 0.0
    %v1970 = vmax.f32 %v1966, 0.0
    %v1971 = vmax.f32 %v1967, 0.0
    %v1972 = vpack.c.bf16 %v1968, %v1968
    %v1973 = vpack.c.bf16 %v1969, %v1969
    %v1974 = vpack.c.bf16 %v1970, %v1970
    %v1975 = vpack.c.bf16 %v1971, %v1971
    %v1976 = vld [vmem:[%s4] sm:$0xff]
    %v1977 = vld [vmem:[%s4 + $0x8] sm:$0xff]
    %v1978 = vld [vmem:[%s4 + $0x10] sm:$0xff]
    %v1979 = vld [vmem:[%s4 + $0x18] sm:$0xff]
    %v1980 = vld [vmem:[%s4 + $0x20] sm:$0xff]
    %v1981 = vld [vmem:[%s4 + $0x28] sm:$0xff]
    %v1982 = vld [vmem:[%s4 + $0x30] sm:$0xff]
    %v1983 = vld [vmem:[%s4 + $0x38] sm:$0xff]
    %v1984 = vld [vmem:[%s4 + $0x40] sm:$0xff]
    %v1985 = vld [vmem:[%s4 + $0x48] sm:$0xff]
    %v1986 = vld [vmem:[%s4 + $0x50] sm:$0xff]
    %v1987 = vld [vmem:[%s4 + $0x58] sm:$0xff]
    %v1988 = vld [vmem:[%s4 + $0x60] sm:$0xff]
    %v1989 = vld [vmem:[%s4 + $0x68] sm:$0xff]
    %v1990 = vld [vmem:[%s4 + $0x70] sm:$0xff]
    %v1991 = vld [vmem:[%s4 + $0x78] sm:$0xff]
    %v1992 = vld [vmem:[%s4 + $0x80] sm:$0xff]
    %v1993 = vld [vmem:[%s4 + $0x88] sm:$0xff]
    %v1994 = vld [vmem:[%s4 + $0x90] sm:$0xff]
    %v1995 = vld [vmem:[%s4 + $0x98] sm:$0xff]
    %v1996 = vld [vmem:[%s4 + $0xa0] sm:$0xff]
    %v1997 = vld [vmem:[%s4 + $0xa8] sm:$0xff]
    %v1998 = vld [vmem:[%s4 + $0xb0] sm:$0xff]
    %v1999 = vld [vmem:[%s4 + $0xb8] sm:$0xff]
    %v2000 = vld [vmem:[%s4 + $0xc0] sm:$0xff]
    %v2001 = vld [vmem:[%s4 + $0xc8] sm:$0xff]
    %v2002 = vld [vmem:[%s4 + $0xd0] sm:$0xff]
    %v2003 = vld [vmem:[%s4 + $0xd8] sm:$0xff]
    %v2004 = vld [vmem:[%s4 + $0xe0] sm:$0xff]
    %v2005 = vld [vmem:[%s4 + $0xe8] sm:$0xff]
    %v2006 = vld [vmem:[%s4 + $0xf0] sm:$0xff]
    %v2007 = vld [vmem:[%s4 + $0xf8] sm:$0xff]
    %v2008 = vld [vmem:[%s4 + $0x100] sm:$0xff]
    %v2009 = vld [vmem:[%s4 + $0x108] sm:$0xff]
    %v2010 = vld [vmem:[%s4 + $0x110] sm:$0xff]
    %v2011 = vld [vmem:[%s4 + $0x118] sm:$0xff]
    %v2012 = vld [vmem:[%s4 + $0x120] sm:$0xff]
    %v2013 = vld [vmem:[%s4 + $0x128] sm:$0xff]
    %v2014 = vld [vmem:[%s4 + $0x130] sm:$0xff]
    %v2015 = vld [vmem:[%s4 + $0x138] sm:$0xff]
    %v2016 = vld [vmem:[%s4 + $0x140] sm:$0xff]
    %v2017 = vld [vmem:[%s4 + $0x148] sm:$0xff]
    %v2018 = vld [vmem:[%s4 + $0x150] sm:$0xff]
    %v2019 = vld [vmem:[%s4 + $0x158] sm:$0xff]
    %v2020 = vld [vmem:[%s4 + $0x160] sm:$0xff]
    %v2021 = vld [vmem:[%s4 + $0x168] sm:$0xff]
    %v2022 = vld [vmem:[%s4 + $0x170] sm:$0xff]
    %v2023 = vld [vmem:[%s4 + $0x178] sm:$0xff]
    %v2024 = vld [vmem:[%s4 + $0x180] sm:$0xff]
    %v2025 = vld [vmem:[%s4 + $0x188] sm:$0xff]
    %v2026 = vld [vmem:[%s4 + $0x190] sm:$0xff]
    %v2027 = vld [vmem:[%s4 + $0x198] sm:$0xff]
    %v2028 = vld [vmem:[%s4 + $0x1a0] sm:$0xff]
    %v2029 = vld [vmem:[%s4 + $0x1a8] sm:$0xff]
    %v2030 = vld [vmem:[%s4 + $0x1b0] sm:$0xff]
    %v2031 = vld [vmem:[%s4 + $0x1b8] sm:$0xff]
    %v2032 = vld [vmem:[%s4 + $0x1c0] sm:$0xff]
    %v2033 = vld [vmem:[%s4 + $0x1c8] sm:$0xff]
    %v2034 = vld [vmem:[%s4 + $0x1d0] sm:$0xff]
    %v2035 = vld [vmem:[%s4 + $0x1d8] sm:$0xff]
    %v2036 = vld [vmem:[%s4 + $0x1e0] sm:$0xff]
    %v2037 = vld [vmem:[%s4 + $0x1e8] sm:$0xff]
    %v2038 = vld [vmem:[%s4 + $0x1f0] sm:$0xff]
    %v2039 = vld [vmem:[%s4 + $0x1f8] sm:$0xff]
    %v2104 = vunpack.c.l.b16 %v1976
    %v2105 = vunpack.c.h.b16 %v1976
    %v2106 = vunpack.c.l.b16 %v1977
    %v2107 = vunpack.c.h.b16 %v1977
    %v2108 = vunpack.c.l.b16 %v1978
    %v2109 = vunpack.c.h.b16 %v1978
    %v2110 = vunpack.c.l.b16 %v1979
    %v2111 = vunpack.c.h.b16 %v1979
    %v2112 = vunpack.c.l.b16 %v1980
    %v2113 = vunpack.c.h.b16 %v1980
    %v2114 = vunpack.c.l.b16 %v1981
    %v2115 = vunpack.c.h.b16 %v1981
    %v2116 = vunpack.c.l.b16 %v1982
    %v2117 = vunpack.c.h.b16 %v1982
    %v2118 = vunpack.c.l.b16 %v1983
    %v2119 = vunpack.c.h.b16 %v1983
    %v2120 = vunpack.c.l.b16 %v1984
    %v2121 = vunpack.c.h.b16 %v1984
    %v2122 = vunpack.c.l.b16 %v1985
    %v2123 = vunpack.c.h.b16 %v1985
    %v2124 = vunpack.c.l.b16 %v1986
    %v2125 = vunpack.c.h.b16 %v1986
    %v2126 = vunpack.c.l.b16 %v1987
    %v2127 = vunpack.c.h.b16 %v1987
    %v2128 = vunpack.c.l.b16 %v1988
    %v2129 = vunpack.c.h.b16 %v1988
    %v2130 = vunpack.c.l.b16 %v1989
    %v2131 = vunpack.c.h.b16 %v1989
    %v2132 = vunpack.c.l.b16 %v1990
    %v2133 = vunpack.c.h.b16 %v1990
    %v2134 = vunpack.c.l.b16 %v1991
    %v2135 = vunpack.c.h.b16 %v1991
    %v2136 = vunpack.c.l.b16 %v1992
    %v2137 = vunpack.c.h.b16 %v1992
    %v2138 = vunpack.c.l.b16 %v1993
    %v2139 = vunpack.c.h.b16 %v1993
    %v2140 = vunpack.c.l.b16 %v1994
    %v2141 = vunpack.c.h.b16 %v1994
    %v2142 = vunpack.c.l.b16 %v1995
    %v2143 = vunpack.c.h.b16 %v1995
    %v2144 = vunpack.c.l.b16 %v1996
    %v2145 = vunpack.c.h.b16 %v1996
    %v2146 = vunpack.c.l.b16 %v1997
    %v2147 = vunpack.c.h.b16 %v1997
    %v2148 = vunpack.c.l.b16 %v1998
    %v2149 = vunpack.c.h.b16 %v1998
    %v2150 = vunpack.c.l.b16 %v1999
    %v2151 = vunpack.c.h.b16 %v1999
    %v2152 = vunpack.c.l.b16 %v2000
    %v2153 = vunpack.c.h.b16 %v2000
    %v2154 = vunpack.c.l.b16 %v2001
    %v2155 = vunpack.c.h.b16 %v2001
    %v2156 = vunpack.c.l.b16 %v2002
    %v2157 = vunpack.c.h.b16 %v2002
    %v2158 = vunpack.c.l.b16 %v2003
    %v2159 = vunpack.c.h.b16 %v2003
    %v2160 = vunpack.c.l.b16 %v2004
    %v2161 = vunpack.c.h.b16 %v2004
    %v2162 = vunpack.c.l.b16 %v2005
    %v2163 = vunpack.c.h.b16 %v2005
    %v2164 = vunpack.c.l.b16 %v2006
    %v2165 = vunpack.c.h.b16 %v2006
    %v2166 = vunpack.c.l.b16 %v2007
    %v2167 = vunpack.c.h.b16 %v2007
    %v2168 = vunpack.c.l.b16 %v2008
    %v2169 = vunpack.c.h.b16 %v2008
    %v2170 = vunpack.c.l.b16 %v2009
    %v2171 = vunpack.c.h.b16 %v2009
    %v2172 = vunpack.c.l.b16 %v2010
    %v2173 = vunpack.c.h.b16 %v2010
    %v2174 = vunpack.c.l.b16 %v2011
    %v2175 = vunpack.c.h.b16 %v2011
    %v2176 = vunpack.c.l.b16 %v2012
    %v2177 = vunpack.c.h.b16 %v2012
    %v2178 = vunpack.c.l.b16 %v2013
    %v2179 = vunpack.c.h.b16 %v2013
    %v2180 = vunpack.c.l.b16 %v2014
    %v2181 = vunpack.c.h.b16 %v2014
    %v2182 = vunpack.c.l.b16 %v2015
    %v2183 = vunpack.c.h.b16 %v2015
    %v2184 = vunpack.c.l.b16 %v2016
    %v2185 = vunpack.c.h.b16 %v2016
    %v2186 = vunpack.c.l.b16 %v2017
    %v2187 = vunpack.c.h.b16 %v2017
    %v2188 = vunpack.c.l.b16 %v2018
    %v2189 = vunpack.c.h.b16 %v2018
    %v2190 = vunpack.c.l.b16 %v2019
    %v2191 = vunpack.c.h.b16 %v2019
    %v2192 = vunpack.c.l.b16 %v2020
    %v2193 = vunpack.c.h.b16 %v2020
    %v2194 = vunpack.c.l.b16 %v2021
    %v2195 = vunpack.c.h.b16 %v2021
    %v2196 = vunpack.c.l.b16 %v2022
    %v2197 = vunpack.c.h.b16 %v2022
    %v2198 = vunpack.c.l.b16 %v2023
    %v2199 = vunpack.c.h.b16 %v2023
    %v2200 = vunpack.c.l.b16 %v2024
    %v2201 = vunpack.c.h.b16 %v2024
    %v2202 = vunpack.c.l.b16 %v2025
    %v2203 = vunpack.c.h.b16 %v2025
    %v2204 = vunpack.c.l.b16 %v2026
    %v2205 = vunpack.c.h.b16 %v2026
    %v2206 = vunpack.c.l.b16 %v2027
    %v2207 = vunpack.c.h.b16 %v2027
    %v2208 = vunpack.c.l.b16 %v2028
    %v2209 = vunpack.c.h.b16 %v2028
    %v2210 = vunpack.c.l.b16 %v2029
    %v2211 = vunpack.c.h.b16 %v2029
    %v2212 = vunpack.c.l.b16 %v2030
    %v2213 = vunpack.c.h.b16 %v2030
    %v2214 = vunpack.c.l.b16 %v2031
    %v2215 = vunpack.c.h.b16 %v2031
    %v2216 = vunpack.c.l.b16 %v2032
    %v2217 = vunpack.c.h.b16 %v2032
    %v2218 = vunpack.c.l.b16 %v2033
    %v2219 = vunpack.c.h.b16 %v2033
    %v2220 = vunpack.c.l.b16 %v2034
    %v2221 = vunpack.c.h.b16 %v2034
    %v2222 = vunpack.c.l.b16 %v2035
    %v2223 = vunpack.c.h.b16 %v2035
    %v2224 = vunpack.c.l.b16 %v2036
    %v2225 = vunpack.c.h.b16 %v2036
    %v2226 = vunpack.c.l.b16 %v2037
    %v2227 = vunpack.c.h.b16 %v2037
    %v2228 = vunpack.c.l.b16 %v2038
    %v2229 = vunpack.c.h.b16 %v2038
    %v2230 = vunpack.c.l.b16 %v2039
    %v2231 = vunpack.c.h.b16 %v2039
    %v2232 = vpack.c.b16 %v2106, %v2104
    %v2233 = vpack.c.b16 %v2107, %v2105
    %v2234 = vpack.c.b16 %v2110, %v2108
    %v2235 = vpack.c.b16 %v2111, %v2109
    %v2236 = vpack.c.b16 %v2114, %v2112
    %v2237 = vpack.c.b16 %v2115, %v2113
    %v2238 = vpack.c.b16 %v2118, %v2116
    %v2239 = vpack.c.b16 %v2119, %v2117
    %v2240 = vpack.c.b16 %v2122, %v2120
    %v2241 = vpack.c.b16 %v2123, %v2121
    %v2242 = vpack.c.b16 %v2126, %v2124
    %v2243 = vpack.c.b16 %v2127, %v2125
    %v2244 = vpack.c.b16 %v2130, %v2128
    %v2245 = vpack.c.b16 %v2131, %v2129
    %v2246 = vpack.c.b16 %v2134, %v2132
    %v2247 = vpack.c.b16 %v2135, %v2133
    %v2248 = vpack.c.b16 %v2138, %v2136
    %v2249 = vpack.c.b16 %v2139, %v2137
    %v2250 = vpack.c.b16 %v2142, %v2140
    %v2251 = vpack.c.b16 %v2143, %v2141
    %v2252 = vpack.c.b16 %v2146, %v2144
    %v2253 = vpack.c.b16 %v2147, %v2145
    %v2254 = vpack.c.b16 %v2150, %v2148
    %v2255 = vpack.c.b16 %v2151, %v2149
    %v2256 = vpack.c.b16 %v2154, %v2152
    %v2257 = vpack.c.b16 %v2155, %v2153
    %v2258 = vpack.c.b16 %v2158, %v2156
    %v2259 = vpack.c.b16 %v2159, %v2157
    %v2260 = vpack.c.b16 %v2162, %v2160
    %v2261 = vpack.c.b16 %v2163, %v2161
    %v2262 = vpack.c.b16 %v2166, %v2164
    %v2263 = vpack.c.b16 %v2167, %v2165
    %v2264 = vpack.c.b16 %v2170, %v2168
    %v2265 = vpack.c.b16 %v2171, %v2169
    %v2266 = vpack.c.b16 %v2174, %v2172
    %v2267 = vpack.c.b16 %v2175, %v2173
    %v2268 = vpack.c.b16 %v2178, %v2176
    %v2269 = vpack.c.b16 %v2179, %v2177
    %v2270 = vpack.c.b16 %v2182, %v2180
    %v2271 = vpack.c.b16 %v2183, %v2181
    %v2272 = vpack.c.b16 %v2186, %v2184
    %v2273 = vpack.c.b16 %v2187, %v2185
    %v2274 = vpack.c.b16 %v2190, %v2188
    %v2275 = vpack.c.b16 %v2191, %v2189
    %v2276 = vpack.c.b16 %v2194, %v2192
    %v2277 = vpack.c.b16 %v2195, %v2193
    %v2278 = vpack.c.b16 %v2198, %v2196
    %v2279 = vpack.c.b16 %v2199, %v2197
    %v2280 = vpack.c.b16 %v2202, %v2200
    %v2281 = vpack.c.b16 %v2203, %v2201
    %v2282 = vpack.c.b16 %v2206, %v2204
    %v2283 = vpack.c.b16 %v2207, %v2205
    %v2284 = vpack.c.b16 %v2210, %v2208
    %v2285 = vpack.c.b16 %v2211, %v2209
    %v2286 = vpack.c.b16 %v2214, %v2212
    %v2287 = vpack.c.b16 %v2215, %v2213
    %v2288 = vpack.c.b16 %v2218, %v2216
    %v2289 = vpack.c.b16 %v2219, %v2217
    %v2290 = vpack.c.b16 %v2222, %v2220
    %v2291 = vpack.c.b16 %v2223, %v2221
    %v2292 = vpack.c.b16 %v2226, %v2224
    %v2293 = vpack.c.b16 %v2227, %v2225
    %v2294 = vpack.c.b16 %v2230, %v2228
    %v2295 = vpack.c.b16 %v2231, %v2229
    %2360 = vmatprep.subr.bf16.mxu0 %v2233
    %2361 = vmatpush1.bf16.msra.mxu0 %v2232
    %2362 = vmatprep.subr.bf16.mxu0 %v2235
    %2363 = vmatpush1.bf16.msra.mxu0 %v2234
    %2364 = vmatprep.subr.bf16.mxu0 %v2237
    %2365 = vmatpush1.bf16.msra.mxu0 %v2236
    %2366 = vmatprep.subr.bf16.mxu0 %v2239
    %2367 = vmatpush1.bf16.msra.mxu0 %v2238
    %2368 = vmatprep.subr.bf16.mxu0 %v2241
    %2369 = vmatpush1.bf16.msra.mxu0 %v2240
    %2370 = vmatprep.subr.bf16.mxu0 %v2243
    %2371 = vmatpush1.bf16.msra.mxu0 %v2242
    %2372 = vmatprep.subr.bf16.mxu0 %v2245
    %2373 = vmatpush1.bf16.msra.mxu0 %v2244
    %2374 = vmatprep.subr.bf16.mxu0 %v2247
    %2375 = vmatpush1.bf16.msra.mxu0 %v2246
    %2376 = vmatprep.subr.bf16.mxu0 %v2249
    %2377 = vmatpush1.bf16.msra.mxu0 %v2248
    %2378 = vmatprep.subr.bf16.mxu0 %v2251
    %2379 = vmatpush1.bf16.msra.mxu0 %v2250
    %2380 = vmatprep.subr.bf16.mxu0 %v2253
    %2381 = vmatpush1.bf16.msra.mxu0 %v2252
    %2382 = vmatprep.subr.bf16.mxu0 %v2255
    %2383 = vmatpush1.bf16.msra.mxu0 %v2254
    %2384 = vmatprep.subr.bf16.mxu0 %v2257
    %2385 = vmatpush1.bf16.msra.mxu0 %v2256
    %2386 = vmatprep.subr.bf16.mxu0 %v2259
    %2387 = vmatpush1.bf16.msra.mxu0 %v2258
    %2388 = vmatprep.subr.bf16.mxu0 %v2261
    %2389 = vmatpush1.bf16.msra.mxu0 %v2260
    %2390 = vmatprep.subr.bf16.mxu0 %v2263
    %2391 = vmatpush1.bf16.msra.mxu0 %v2262
    %2392 = vmatprep.mubr.bf16.mxu0 %v1973
    %2393 = vmatmul.mubr.bf16.gmra.mrb[0].mxu0 %v1972
    %v2394 = vpop.f32.mrb[0].mxu0
    %v2395 = vadd.f32 0.0, %v2394
    %v2396 = vpop.f32.mrb[0].mxu0
    %v2397 = vadd.f32 0.0, %v2396
    %v2398 = vpop.f32.mrb[0].mxu0
    %v2399 = vpop.f32.mrb[0].mxu0
    %2400 = vdwg.mxu0
    %2401 = vmatprep.subr.bf16.mxu0 %v2265
    %2402 = vmatpush1.bf16.msra.mxu0 %v2264
    %2403 = vmatprep.subr.bf16.mxu0 %v2267
    %2404 = vmatpush1.bf16.msra.mxu0 %v2266
    %2405 = vmatprep.subr.bf16.mxu0 %v2269
    %2406 = vmatpush1.bf16.msra.mxu0 %v2268
    %2407 = vmatprep.subr.bf16.mxu0 %v2271
    %2408 = vmatpush1.bf16.msra.mxu0 %v2270
    %2409 = vmatprep.subr.bf16.mxu0 %v2273
    %2410 = vmatpush1.bf16.msra.mxu0 %v2272
    %2411 = vmatprep.subr.bf16.mxu0 %v2275
    %2412 = vmatpush1.bf16.msra.mxu0 %v2274
    %2413 = vmatprep.subr.bf16.mxu0 %v2277
    %2414 = vmatpush1.bf16.msra.mxu0 %v2276
    %2415 = vmatprep.subr.bf16.mxu0 %v2279
    %2416 = vmatpush1.bf16.msra.mxu0 %v2278
    %2417 = vmatprep.subr.bf16.mxu0 %v2281
    %2418 = vmatpush1.bf16.msra.mxu0 %v2280
    %2419 = vmatprep.subr.bf16.mxu0 %v2283
    %2420 = vmatpush1.bf16.msra.mxu0 %v2282
    %2421 = vmatprep.subr.bf16.mxu0 %v2285
    %2422 = vmatpush1.bf16.msra.mxu0 %v2284
    %2423 = vmatprep.subr.bf16.mxu0 %v2287
    %2424 = vmatpush1.bf16.msra.mxu0 %v2286
    %2425 = vmatprep.subr.bf16.mxu0 %v2289
    %2426 = vmatpush1.bf16.msra.mxu0 %v2288
    %2427 = vmatprep.subr.bf16.mxu0 %v2291
    %2428 = vmatpush1.bf16.msra.mxu0 %v2290
    %2429 = vmatprep.subr.bf16.mxu0 %v2293
    %2430 = vmatpush1.bf16.msra.mxu0 %v2292
    %2431 = vmatprep.subr.bf16.mxu0 %v2295
    %2432 = vmatpush1.bf16.msra.mxu0 %v2294
    %2433 = vmatprep.mubr.bf16.mxu0 %v1975
    %2434 = vmatmul.mubr.bf16.gmra.mrb[0].mxu0 %v1974
    %v2435 = vpop.f32.mrb[0].mxu0
    %v2436 = vadd.f32 %v2395, %v2435
    %v2437 = vpop.f32.mrb[0].mxu0
    %v2438 = vadd.f32 %v2397, %v2437
    %v2439 = vpop.f32.mrb[0].mxu0
    %v2440 = vpop.f32.mrb[0].mxu0
    %2441 = vdwg.mxu0
    %v2442 = vld [vmem:[%s5] sm:$0x3]
    %v2443 = vld [vmem:[%s6] sm:$0x3]
    %v2444 = vrot.slane %v2436, 4
    %v2445 = vadd.f32 %v2436, %v2444
    %v2446 = vrot.slane %v2445, 2
    %v2447 = vadd.f32 %v2445, %v2446
    %v2448 = vrot.slane %v2447, 1
    %v2449 = vadd.f32 %v2447, %v2448
    %v2450 = vrot.slane %v2438, 4
    %v2451 = vadd.f32 %v2438, %v2450
    %v2452 = vrot.slane %v2451, 2
    %v2453 = vadd.f32 %v2451, %v2452
    %v2454 = vrot.slane %v2453, 1
    %v2455 = vadd.f32 %v2453, %v2454
    %v2456 = vmul.f32 %v2449, 0.125
    %v2457 = vmul.f32 %v2455, 0.125
    %v2458 = vmul.f32 %v2436, %v2436
    %v2459 = vmul.f32 %v2438, %v2438
    %v2460 = vrot.slane %v2458, 4
    %v2461 = vadd.f32 %v2458, %v2460
    %v2462 = vrot.slane %v2461, 2
    %v2463 = vadd.f32 %v2461, %v2462
    %v2464 = vrot.slane %v2463, 1
    %v2465 = vadd.f32 %v2463, %v2464
    %v2466 = vrot.slane %v2459, 4
    %v2467 = vadd.f32 %v2459, %v2466
    %v2468 = vrot.slane %v2467, 2
    %v2469 = vadd.f32 %v2467, %v2468
    %v2470 = vrot.slane %v2469, 1
    %v2471 = vadd.f32 %v2469, %v2470
    %v2472 = vmul.f32 %v2465, 0.125
    %v2473 = vmul.f32 %v2471, 0.125
    %v2474 = vmul.f32 %v2456, %v2456
    %v2475 = vmul.f32 %v2457, %v2457
    %v2476 = vsub.f32 %v2472, %v2474
    %v2477 = vsub.f32 %v2473, %v2475
    %v2478 = vmax.f32 %v2476, 0.0
    %v2479 = vmax.f32 %v2477, 0.0
    %v2480 = vadd.f32 %v2478, 1e-05
    %v2481 = vadd.f32 %v2479, 1e-05
    %v2482 = vrsqrt.pop %v2480
    %v2483 = vrsqrt.pop %v2481
    %v2486 = vcombine.low %v2482, %v2483
    %v2488 = vunpack.c.l.s4 1966171168
    %v2489 = vunpack.c.0.s8 %v2488
    %v2490 = vlaneseq
    %v2491 = vshrl.u32 %v2490, 7
    %v2492 = vsub.s32 %v2489, %v2491
    %v2493 = vrot.slane %v2486, %v2492
    %v2495 = vunpack.c.l.s4 1966171168
    %v2496 = vunpack.c.0.s8 %v2495
    %v2497 = vlaneseq
    %v2498 = vshrl.u32 %v2497, 7
    %v2499 = vsub.s32 %v2496, %v2498
    %v2500 = vrot.slane %v2493, %v2499
    %v2502 = vmul.f32 %v2442, %v2500
    %v2504 = vlaneseq
    %v2505 = vshrl.u32 %v2504, 7
    %v2506 = vsub.s32 0, %v2505
    %v2507 = vrot.slane %v2502, %v2506
    %v2508 = vlaneseq
    %v2509 = vshrl.u32 %v2508, 7
    %v2510 = vsub.s32 1, %v2509
    %v2511 = vrot.slane %v2502, %v2510
    %v2514 = vmul.f32 %v2456, %v2507
    %v2515 = vmul.f32 %v2457, %v2511
    %v2518 = vcombine.low %v2514, %v2515
    %v2520 = vunpack.c.l.s4 1966171168
    %v2521 = vunpack.c.0.s8 %v2520
    %v2522 = vlaneseq
    %v2523 = vshrl.u32 %v2522, 7
    %v2524 = vsub.s32 %v2521, %v2523
    %v2525 = vrot.slane %v2518, %v2524
    %v2527 = vunpack.c.l.s4 1966171168
    %v2528 = vunpack.c.0.s8 %v2527
    %v2529 = vlaneseq
    %v2530 = vshrl.u32 %v2529, 7
    %v2531 = vsub.s32 %v2528, %v2530
    %v2532 = vrot.slane %v2525, %v2531
    %v2534 = vsub.f32 %v2443, %v2532
    %v2535 = vmul.f32 %v2436, %v2507
    %v2536 = vmul.f32 %v2438, %v2511
    %v2538 = vlaneseq
    %v2539 = vshrl.u32 %v2538, 7
    %v2540 = vsub.s32 0, %v2539
    %v2541 = vrot.slane %v2534, %v2540
    %v2542 = vlaneseq
    %v2543 = vshrl.u32 %v2542, 7
    %v2544 = vsub.s32 1, %v2543
    %v2545 = vrot.slane %v2534, %v2544
    %v2548 = vadd.f32 %v2535, %v2541
    %v2549 = vadd.f32 %v2536, %v2545
    %v2550 = vmax.f32 %v2548, 0.0
    %v2551 = vmax.f32 %v2549, 0.0
    %v2552 = vpack.c.bf16 %v2550, %v2550
    %v2553 = vpack.c.bf16 %v2551, %v2551
    %v2554 = vld [vmem:[#allocation5] sm:$0xf]
    %v2555 = vld [vmem:[#allocation5 + $0x4] sm:$0xf]
    %v2556 = vld [vmem:[#allocation5 + $0x8] sm:$0xf]
    %v2557 = vld [vmem:[#allocation5 + $0xc] sm:$0xf]
    %v2558 = vld [vmem:[#allocation5 + $0x10] sm:$0xf]
    %v2559 = vld [vmem:[#allocation5 + $0x14] sm:$0xf]
    %v2560 = vld [vmem:[#allocation5 + $0x18] sm:$0xf]
    %v2561 = vld [vmem:[#allocation5 + $0x1c] sm:$0xf]
    %v2562 = vld [vmem:[#allocation5 + $0x20] sm:$0xf]
    %v2563 = vld [vmem:[#allocation5 + $0x24] sm:$0xf]
    %v2564 = vld [vmem:[#allocation5 + $0x28] sm:$0xf]
    %v2565 = vld [vmem:[#allocation5 + $0x2c] sm:$0xf]
    %v2566 = vld [vmem:[#allocation5 + $0x30] sm:$0xf]
    %v2567 = vld [vmem:[#allocation5 + $0x34] sm:$0xf]
    %v2568 = vld [vmem:[#allocation5 + $0x38] sm:$0xf]
    %v2569 = vld [vmem:[#allocation5 + $0x3c] sm:$0xf]
    %v2570 = vld [vmem:[#allocation5 + $0x40] sm:$0xf]
    %v2571 = vld [vmem:[#allocation5 + $0x44] sm:$0xf]
    %v2572 = vld [vmem:[#allocation5 + $0x48] sm:$0xf]
    %v2573 = vld [vmem:[#allocation5 + $0x4c] sm:$0xf]
    %v2574 = vld [vmem:[#allocation5 + $0x50] sm:$0xf]
    %v2575 = vld [vmem:[#allocation5 + $0x54] sm:$0xf]
    %v2576 = vld [vmem:[#allocation5 + $0x58] sm:$0xf]
    %v2577 = vld [vmem:[#allocation5 + $0x5c] sm:$0xf]
    %v2578 = vld [vmem:[#allocation5 + $0x60] sm:$0xf]
    %v2579 = vld [vmem:[#allocation5 + $0x64] sm:$0xf]
    %v2580 = vld [vmem:[#allocation5 + $0x68] sm:$0xf]
    %v2581 = vld [vmem:[#allocation5 + $0x6c] sm:$0xf]
    %v2582 = vld [vmem:[#allocation5 + $0x70] sm:$0xf]
    %v2583 = vld [vmem:[#allocation5 + $0x74] sm:$0xf]
    %v2584 = vld [vmem:[#allocation5 + $0x78] sm:$0xf]
    %v2585 = vld [vmem:[#allocation5 + $0x7c] sm:$0xf]
    %v2618 = vunpack.c.l.b16 %v2554
    %v2619 = vunpack.c.l.b16 %v2555
    %v2620 = vunpack.c.l.b16 %v2556
    %v2621 = vunpack.c.l.b16 %v2557
    %v2622 = vunpack.c.l.b16 %v2558
    %v2623 = vunpack.c.l.b16 %v2559
    %v2624 = vunpack.c.l.b16 %v2560
    %v2625 = vunpack.c.l.b16 %v2561
    %v2626 = vunpack.c.l.b16 %v2562
    %v2627 = vunpack.c.l.b16 %v2563
    %v2628 = vunpack.c.l.b16 %v2564
    %v2629 = vunpack.c.l.b16 %v2565
    %v2630 = vunpack.c.l.b16 %v2566
    %v2631 = vunpack.c.l.b16 %v2567
    %v2632 = vunpack.c.l.b16 %v2568
    %v2633 = vunpack.c.l.b16 %v2569
    %v2634 = vunpack.c.l.b16 %v2570
    %v2635 = vunpack.c.l.b16 %v2571
    %v2636 = vunpack.c.l.b16 %v2572
    %v2637 = vunpack.c.l.b16 %v2573
    %v2638 = vunpack.c.l.b16 %v2574
    %v2639 = vunpack.c.l.b16 %v2575
    %v2640 = vunpack.c.l.b16 %v2576
    %v2641 = vunpack.c.l.b16 %v2577
    %v2642 = vunpack.c.l.b16 %v2578
    %v2643 = vunpack.c.l.b16 %v2579
    %v2644 = vunpack.c.l.b16 %v2580
    %v2645 = vunpack.c.l.b16 %v2581
    %v2646 = vunpack.c.l.b16 %v2582
    %v2647 = vunpack.c.l.b16 %v2583
    %v2648 = vunpack.c.l.b16 %v2584
    %v2649 = vunpack.c.l.b16 %v2585
    %v2650 = vpack.c.b16 %v2619, %v2618
    %v2651 = vpack.c.b16 %v2621, %v2620
    %v2652 = vpack.c.b16 %v2623, %v2622
    %v2653 = vpack.c.b16 %v2625, %v2624
    %v2654 = vpack.c.b16 %v2627, %v2626
    %v2655 = vpack.c.b16 %v2629, %v2628
    %v2656 = vpack.c.b16 %v2631, %v2630
    %v2657 = vpack.c.b16 %v2633, %v2632
    %v2658 = vpack.c.b16 %v2635, %v2634
    %v2659 = vpack.c.b16 %v2637, %v2636
    %v2660 = vpack.c.b16 %v2639, %v2638
    %v2661 = vpack.c.b16 %v2641, %v2640
    %v2662 = vpack.c.b16 %v2643, %v2642
    %v2663 = vpack.c.b16 %v2645, %v2644
    %v2664 = vpack.c.b16 %v2647, %v2646
    %v2665 = vpack.c.b16 %v2649, %v2648
    %2682 = vmatprep.subr.bf16.mxu0 0
    %2683 = vmatpush1.bf16.msra.mxu0 %v2650
    %2684 = vmatprep.subr.bf16.mxu0 0
    %2685 = vmatpush1.bf16.msra.mxu0 %v2651
    %2686 = vmatprep.subr.bf16.mxu0 0
    %2687 = vmatpush1.bf16.msra.mxu0 %v2652
    %2688 = vmatprep.subr.bf16.mxu0 0
    %2689 = vmatpush1.bf16.msra.mxu0 %v2653
    %2690 = vmatprep.subr.bf16.mxu0 0
    %2691 = vmatpush1.bf16.msra.mxu0 %v2654
    %2692 = vmatprep.subr.bf16.mxu0 0
    %2693 = vmatpush1.bf16.msra.mxu0 %v2655
    %2694 = vmatprep.subr.bf16.mxu0 0
    %2695 = vmatpush1.bf16.msra.mxu0 %v2656
    %2696 = vmatprep.subr.bf16.mxu0 0
    %2697 = vmatpush1.bf16.msra.mxu0 %v2657
    %2698 = vmatprep.subr.bf16.mxu0 0
    %2699 = vmatpush1.bf16.msra.mxu0 %v2658
    %2700 = vmatprep.subr.bf16.mxu0 0
    %2701 = vmatpush1.bf16.msra.mxu0 %v2659
    %2702 = vmatprep.subr.bf16.mxu0 0
    %2703 = vmatpush1.bf16.msra.mxu0 %v2660
    %2704 = vmatprep.subr.bf16.mxu0 0
    %2705 = vmatpush1.bf16.msra.mxu0 %v2661
    %2706 = vmatprep.subr.bf16.mxu0 0
    %2707 = vmatpush1.bf16.msra.mxu0 %v2662
    %2708 = vmatprep.subr.bf16.mxu0 0
    %2709 = vmatpush1.bf16.msra.mxu0 %v2663
    %2710 = vmatprep.subr.bf16.mxu0 0
    %2711 = vmatpush1.bf16.msra.mxu0 %v2664
    %2712 = vmatprep.subr.bf16.mxu0 0
    %2713 = vmatpush1.bf16.msra.mxu0 %v2665
    %2714 = vmatprep.mubr.bf16.mxu0 %v2553
    %2715 = vmatmul.mubr.bf16.gmra.mrb[0].mxu0 %v2552
    %v2716 = vpop.f32.mrb[0].mxu0
    %v2717 = vadd.f32 0.0, %v2716
    %v2718 = vpop.f32.mrb[0].mxu0
    %v2719 = vpop.f32.mrb[0].mxu0
    %v2720 = vpop.f32.mrb[0].mxu0
    %2721 = vdwg.mxu0
    %v2722 = vld [vmem:[%s8] sm:$0x1]
    %v2723 = vld [vmem:[%s9] sm:$0x1]
    %v2724 = vrot.slane %v2717, 4
    %v2725 = vadd.f32 %v2717, %v2724
    %v2726 = vrot.slane %v2725, 2
    %v2727 = vadd.f32 %v2725, %v2726
    %v2728 = vrot.slane %v2727, 1
    %v2729 = vadd.f32 %v2727, %v2728
    %v2730 = vmul.f32 %v2729, 0.125
    %v2731 = vmul.f32 %v2717, %v2717
    %v2732 = vrot.slane %v2731, 4
    %v2733 = vadd.f32 %v2731, %v2732
    %v2734 = vrot.slane %v2733, 2
    %v2735 = vadd.f32 %v2733, %v2734
    %v2736 = vrot.slane %v2735, 1
    %v2737 = vadd.f32 %v2735, %v2736
    %v2738 = vmul.f32 %v2737, 0.125
    %v2739 = vmul.f32 %v2730, %v2730
    %v2740 = vsub.f32 %v2738, %v2739
    %v2741 = vmax.f32 %v2740, 0.0
    %v2742 = vadd.f32 %v2741, 1e-05
    %v2743 = vrsqrt.pop %v2742
    %v2744 = vmul.f32 %v2722, %v2743
    %v2745 = vmul.f32 %v2730, %v2744
    %v2746 = vsub.f32 %v2723, %v2745
    %v2748 = vlaneseq
    %v2749 = vshrl.u32 %v2748, 7
    %v2750 = vsub.s32 0, %v2749
    %v2751 = vrot.slane %v2744, %v2750
    %v2753 = vmul.f32 %v2717, %v2751
    %v2755 = vlaneseq
    %v2756 = vshrl.u32 %v2755, 7
    %v2757 = vsub.s32 0, %v2756
    %v2758 = vrot.slane %v2746, %v2757
    %v2760 = vadd.f32 %v2753, %v2758
    %v2761 = vmax.f32 %v2760, 0.0
    %v2762 = vpack.c.bf16 %v2761, %v2761
    %v2763 = vld [vmem:[%s10] sm:$0xf]
    %v2764 = vld [vmem:[%s10 + $0x4] sm:$0xf]
    %v2765 = vld [vmem:[%s10 + $0x8] sm:$0xf]
    %v2766 = vld [vmem:[%s10 + $0xc] sm:$0xf]
    %v2767 = vld [vmem:[%s10 + $0x10] sm:$0xf]
    %v2768 = vld [vmem:[%s10 + $0x14] sm:$0xf]
    %v2769 = vld [vmem:[%s10 + $0x18] sm:$0xf]
    %v2770 = vld [vmem:[%s10 + $0x1c] sm:$0xf]
    %v2771 = vld [vmem:[%s10 + $0x20] sm:$0xf]
    %v2772 = vld [vmem:[%s10 + $0x24] sm:$0xf]
    %v2773 = vld [vmem:[%s10 + $0x28] sm:$0xf]
    %v2774 = vld [vmem:[%s10 + $0x2c] sm:$0xf]
    %v2775 = vld [vmem:[%s10 + $0x30] sm:$0xf]
    %v2776 = vld [vmem:[%s10 + $0x34] sm:$0xf]
    %v2777 = vld [vmem:[%s10 + $0x38] sm:$0xf]
    %v2778 = vld [vmem:[%s10 + $0x3c] sm:$0xf]
    %v2779 = vld [vmem:[%s11] sm:$0x1]
    %v2781 = vlaneseq
    %v2782 = vshrl.u32 %v2781, 7
    %v2783 = vsub.s32 0, %v2782
    %v2784 = vrot.slane %v2779, %v2783
    %v2802 = vunpack.c.l.b16 %v2763
    %v2803 = vunpack.c.l.b16 %v2764
    %v2804 = vunpack.c.l.b16 %v2765
    %v2805 = vunpack.c.l.b16 %v2766
    %v2806 = vunpack.c.l.b16 %v2767
    %v2807 = vunpack.c.l.b16 %v2768
    %v2808 = vunpack.c.l.b16 %v2769
    %v2809 = vunpack.c.l.b16 %v2770
    %v2810 = vunpack.c.l.b16 %v2771
    %v2811 = vunpack.c.l.b16 %v2772
    %v2812 = vunpack.c.l.b16 %v2773
    %v2813 = vunpack.c.l.b16 %v2774
    %v2814 = vunpack.c.l.b16 %v2775
    %v2815 = vunpack.c.l.b16 %v2776
    %v2816 = vunpack.c.l.b16 %v2777
    %v2817 = vunpack.c.l.b16 %v2778
    %v2818 = vpack.c.b16 %v2803, %v2802
    %v2819 = vpack.c.b16 %v2805, %v2804
    %v2820 = vpack.c.b16 %v2807, %v2806
    %v2821 = vpack.c.b16 %v2809, %v2808
    %v2822 = vpack.c.b16 %v2811, %v2810
    %v2823 = vpack.c.b16 %v2813, %v2812
    %v2824 = vpack.c.b16 %v2815, %v2814
    %v2825 = vpack.c.b16 %v2817, %v2816
    %2834 = vmatprep.subr.bf16.mxu0 0
    %2835 = vmatpush1.bf16.msra.mxu0 %v2818
    %2836 = vmatprep.subr.bf16.mxu0 0
    %2837 = vmatpush1.bf16.msra.mxu0 %v2819
    %2838 = vmatprep.subr.bf16.mxu0 0
    %2839 = vmatpush1.bf16.msra.mxu0 %v2820
    %2840 = vmatprep.subr.bf16.mxu0 0
    %2841 = vmatpush1.bf16.msra.mxu0 %v2821
    %2842 = vmatprep.subr.bf16.mxu0 0
    %2843 = vmatpush1.bf16.msra.mxu0 %v2822
    %2844 = vmatprep.subr.bf16.mxu0 0
    %2845 = vmatpush1.bf16.msra.mxu0 %v2823
    %2846 = vmatprep.subr.bf16.mxu0 0
    %2847 = vmatpush1.bf16.msra.mxu0 %v2824
    %2848 = vmatprep.subr.bf16.mxu0 0
    %2849 = vmatpush1.bf16.msra.mxu0 %v2825
    %2850 = vmatprep.subr.bf16.mxu0 0
    %2851 = vmatpush1.bf16.msra.mxu0 0
    %2852 = vmatprep.subr.bf16.mxu0 0
    %2853 = vmatpush1.bf16.msra.mxu0 0
    %2854 = vmatprep.subr.bf16.mxu0 0
    %2855 = vmatpush1.bf16.msra.mxu0 0
    %2856 = vmatprep.subr.bf16.mxu0 0
    %2857 = vmatpush1.bf16.msra.mxu0 0
    %2858 = vmatprep.subr.bf16.mxu0 0
    %2859 = vmatpush1.bf16.msra.mxu0 0
    %2860 = vmatprep.subr.bf16.mxu0 0
    %2861 = vmatpush1.bf16.msra.mxu0 0
    %2862 = vmatprep.subr.bf16.mxu0 0
    %2863 = vmatpush1.bf16.msra.mxu0 0
    %2864 = vmatprep.subr.bf16.mxu0 0
    %2865 = vmatpush1.bf16.msra.mxu0 0
    %2866 = vmatprep.mubr.bf16.mxu0 0
    %2867 = vmatmul.mubr.bf16.gmra.mrb[0].mxu0 %v2762
    %v2868 = vpop.f32.mrb[0].mxu0
    %v2869 = vadd.f32 %v2784, %v2868
    %v2870 = vpop.f32.mrb[0].mxu0
    %v2871 = vpop.f32.mrb[0].mxu0
    %v2872 = vpop.f32.mrb[0].mxu0
    %2873 = vdwg.mxu0
    %2874 = vmax.xlane.f32.xlu0 %v2869
    %v2875 = vpop.xlane.xlu0 %2874
    %v2876 = vsub.f32 %v2869, %v2875
    %v2877 = vmul.f32 %v2876, 1.442695
    %v2878 = vpow.pop %v2877
    %2879 = vadd.xlane.f32.xlu0 %v2878
    %v2880 = vpop.xlane.xlu0 %2879
    %v2881 = vrcp.pop %v2880
    %v2882 = vmul.f32 %v2878, %v2881
    %2883 = vst [vmem:[#allocation7] sm:$0xff] %v2882
    // Predicated region
    $region58: #{net_forward.1} parent=1 // pred_check
      _
    $region59: #{net_forward.1} parent=1 // pred_check_branch
      %2885 = sbr.rel (0) target = $region61
    $region60: #{net_forward.1} parent=1 // pred_region
      %s2887 = ssub.s32 128, 128
      %2888 = vsyncadd [#allocation4], %s2887
      %s2890 = sshll.u32 [#allocation7], 4
      %s2891 = int_to_ptr.vmem [resolvable:$true] %s2890
      %2893 = dma.vmem_to_hbm [thread:$0]  %s2891, 128, %s12, [#allocation4]
    $region61: #{net_forward.1} parent=1 // pred_fallthru
      _
    // Predicated region
    $region62: #{net_forward.1} parent=1 // pred_check
      _
    $region63: #{net_forward.1} parent=1 // pred_check_branch
      %2895 = sbr.rel (0) target = $region65
    $region64: #{net_forward.1} parent=1 // pred_region
      %2896 = dma.done [#allocation4], 128
    $region65: #{net_forward.1} parent=1 // pred_fallthru
      _
    %2897 = vsyncpa [#allocation3], 1
    %2898 = vsyncpa [#allocation6], 1
    %2899 = vsyncpa [#allocation4], 1

</llo_original>
